<compile_context>
chip_gen: v5e
topology: v5e:2x2
jax: 0.10.0
libtpu: 0.0.40
codegen_flags: <defaults>
</compile_context>

<pallas_src>
import numpy as np
import jax
import jax.numpy as jnp
from jax import lax
from jax.experimental import pallas as pl
from jax.experimental.pallas import tpu as pltpu

BN_EPS = 1e-5


def _round_up(v, m):
    return (v + m - 1) // m * m


def model_forward(x, w1, b1, g1, be1, g2, be2, w2, b2):
    N, C, H, W = x.shape
    assert C == 3, "Model is Conv2d(3, 3, 3)"
    Ho1, Wo1 = H - 2, W - 2          # after first 3x3 conv
    Ho2, Wo2 = Ho1 - 2, Wo1 - 2      # after second 3x3 conv

    total = N * H * W                # flattened frame length (valid data)
    max_d = 2 * W + 2                # largest tap shift (dy=2, dx=2)
    W2L = _round_up(total, 128)          # conv2 / BN2 / output lane width
    W1L = _round_up(W2L + max_d, 128)    # conv1 / BN1 lane width
    XL = _round_up(W1L + max_d, 128)     # padded input lane width
    inv_cnt1 = 1.0 / float(N * Ho1 * Wo1)   # BN1 element count
    inv_cnt2 = 1.0 / float(N * Ho2 * Wo2)   # BN2 element count

    def kernel(x_ref, aux_ref, out_ref, col_ref):
        # --- packed parameter slab (single VMEM input) ---
        w_aug = aux_ref[0:3, 0:28]        # conv weights (27 taps) + bias column
        g1c = aux_ref[0:3, 28:29]         # (3,1)
        be1c = aux_ref[0:3, 29:30]
        g2c = aux_ref[0:3, 30:31]
        be2c = aux_ref[0:3, 31:32]
        eye3 = aux_ref[0:3, 32:35]        # identity, used to diagonalize scale
        w2r = aux_ref[3:4, 0:3]           # (1,3) 1x1-conv weight row
        b2v = aux_ref[3:4, 3:4]           # (1,1)
        m1 = aux_ref[4:5, :]              # (1, W1L) BN1 validity mask
        m2 = aux_ref[5:6, 0:W2L]          # (1, W2L) BN2 validity mask

        # Ones row of the im2col stack (folds the conv bias); written once at
        # full width, reused by both convs.
        col_ref[27:28, :] = jnp.ones((1, W1L), jnp.float32)

        def conv3x3(v, out_w):
            # Valid 3x3 conv on the flattened frame as a single im2col matmul:
            # stack the 9 lane-shifted tap slices into the (28, out_w) scratch
            # (bias row already present) and do one (3,28)@(28,out_w) MXU dot.
            for k in range(9):
                dy, dx = k // 3, k % 3
                d = dy * W + dx
                col_ref[3 * k:3 * k + 3, 0:out_w] = v[:, d:d + out_w]
            return jnp.dot(w_aug, col_ref[0:28, 0:out_w],
                           preferred_element_type=jnp.float32)   # (3, out_w)

        def bn_fold(v, mask, inv_cnt, g, be):
            # Training-mode BatchNorm2d statistics only (normalization + affine
            # are folded into the 1x1 conv).  Masked lanes (wrap-around garbage
            # / padding) are excluded.  var = E[x^2] - mean^2 (biased).
            vm = v * mask
            mean = jnp.sum(vm, axis=-1, keepdims=True) * inv_cnt    # (3,1)
            ex2 = jnp.sum(vm * v, axis=-1, keepdims=True) * inv_cnt
            var = ex2 - mean * mean
            sc = g * lax.rsqrt(var + BN_EPS)                        # (3,1)
            sh = be - sc * mean                                     # (3,1)
            return sc, sh

        s = conv3x3(x_ref[...], W1L)      # (3, W1L)  first conv output
        u = conv3x3(s, W2L)               # (3, W2L)  second conv output

        sc1, sh1 = bn_fold(s, m1, inv_cnt1, g1c, be1c)
        sc2, sh2 = bn_fold(u, m2, inv_cnt2, g2c, be2c)

        # Fold BN + 1x1 conv:  y = (w2 ⊙ sc) @ v + (b2 + w2 @ sh)
        w_eff1 = jnp.dot(w2r, sc1 * eye3, preferred_element_type=jnp.float32)
        w_eff2 = jnp.dot(w2r, sc2 * eye3, preferred_element_type=jnp.float32)
        b_eff1 = b2v + jnp.dot(w2r, sh1, preferred_element_type=jnp.float32)
        b_eff2 = b2v + jnp.dot(w2r, sh2, preferred_element_type=jnp.float32)

        out_ref[0:1, :] = jnp.dot(w_eff1, s[:, 0:W2L],
                                  preferred_element_type=jnp.float32) + b_eff1
        out_ref[1:2, :] = jnp.dot(w_eff2, u,
                                  preferred_element_type=jnp.float32) + b_eff2

    # ---- wrapper-side layout plumbing (plain JAX / trace-time constants) ----
    # Input: NCHW -> (C, N*H*W), zero-padded to a lane-aligned width.
    xf = jnp.transpose(x, (1, 0, 2, 3)).reshape(C, total).astype(jnp.float32)
    xf = jnp.pad(xf, ((0, 0), (0, XL - total)))

    # Conv weights: (cout,cin,3,3) -> (cout, ky*9+kx*3+cin), bias column appended.
    w_aug = jnp.concatenate(
        [jnp.transpose(w1, (0, 2, 3, 1)).reshape(3, 27).astype(jnp.float32),
         b1.reshape(3, 1).astype(jnp.float32)], axis=1)              # (3, 28)

    # Static frame-validity masks (1.0 at lanes holding a valid conv output).
    lane = np.arange(W1L)
    rem = lane % (H * W)
    yy, xx = rem // W, rem % W
    valid = lane < total
    mask1 = (valid & (yy < Ho1) & (xx < Wo1)).astype(np.float32)
    mask2 = (valid & (yy < Ho2) & (xx < Wo2)).astype(np.float32)

    aux = jnp.zeros((8, W1L), jnp.float32)
    aux = aux.at[0:3, 0:28].set(w_aug)
    aux = aux.at[0:3, 28].set(g1.astype(jnp.float32))
    aux = aux.at[0:3, 29].set(be1.astype(jnp.float32))
    aux = aux.at[0:3, 30].set(g2.astype(jnp.float32))
    aux = aux.at[0:3, 31].set(be2.astype(jnp.float32))
    aux = aux.at[0:3, 32:35].set(jnp.eye(3, dtype=jnp.float32))
    aux = aux.at[3, 0:3].set(w2.reshape(3).astype(jnp.float32))
    aux = aux.at[3, 3].set(b2.astype(jnp.float32)[0])
    aux = aux.at[4, :].set(jnp.asarray(mask1))
    aux = aux.at[5, :].set(jnp.asarray(mask2))

    vmem = pl.BlockSpec(memory_space=pltpu.MemorySpace.VMEM)
    out = pl.pallas_call(
        kernel,
        out_shape=jax.ShapeDtypeStruct((2, W2L), jnp.float32),
        in_specs=[vmem, vmem],
        out_specs=vmem,
        scratch_shapes=[pltpu.VMEM((28, W1L), jnp.float32)],   # im2col stack
    )(xf, aux)

    # Un-pad / crop back to NCHW.
    y1 = out[0, :total].reshape(N, H, W)[:, :Ho1, :Wo1][:, None, :, :]
    y2 = out[1, :total].reshape(N, H, W)[:, :Ho2, :Wo2][:, None, :, :]
    return y1, y2


def reference_forward(x, w1, b1, g1, be1, g2, be2, w2, b2):
    """Plain-JAX reference for correctness checking."""
    def conv(inp, w, b):
        out = lax.conv_general_dilated(
            inp, w, window_strides=(1, 1), padding="VALID",
            dimension_numbers=("NCHW", "OIHW", "NCHW"),
            precision=lax.Precision.HIGHEST)
        return out + b[None, :, None, None]

    def bn(inp, g, be):
        mean = jnp.mean(inp, axis=(0, 2, 3), keepdims=True)
        var = jnp.mean((inp - mean) ** 2, axis=(0, 2, 3), keepdims=True)
        return (inp - mean) / jnp.sqrt(var + BN_EPS) * g[None, :, None, None] \
               + be[None, :, None, None]

    s = conv(x, w1, b1)
    t1 = bn(s, g1, be1)
    t2 = bn(conv(s, w1, b1), g2, be2)
    y1 = conv(t1, w2.reshape(1, 3, 1, 1), b2)
    y2 = conv(t2, w2.reshape(1, 3, 1, 1), b2)
    return y1, y2


if __name__ == "__main__":
    key = jax.random.PRNGKey(0)
    ks = jax.random.split(key, 8)

    N, C, H, W = 2, 3, 16, 16
    x = jax.random.normal(ks[0], (N, C, H, W), dtype=jnp.float32)

    # Conv2d(3, 3, 3) parameters
    w1 = jax.random.normal(ks[1], (3, 3, 3, 3), dtype=jnp.float32) * 0.2
    b1 = jax.random.normal(ks[2], (3,), dtype=jnp.float32) * 0.1
    # BatchNorm2d(3) x2 (affine)
    g1 = 1.0 + 0.1 * jax.random.normal(ks[3], (3,), dtype=jnp.float32)
    be1 = 0.1 * jax.random.normal(ks[4], (3,), dtype=jnp.float32)
    g2 = 1.0 + 0.1 * jax.random.normal(ks[5], (3,), dtype=jnp.float32)
    be2 = 0.1 * jax.random.normal(ks[6], (3,), dtype=jnp.float32)
    # Conv2d(3, 1, 1) parameters
    w2 = jax.random.normal(ks[7], (1, 3, 1, 1), dtype=jnp.float32) * 0.3
    b2 = jnp.array([0.05], dtype=jnp.float32)

    y1, y2 = model_forward(x, w1, b1, g1, be1, g2, be2, w2, b2)
    jax.block_until_ready((y1, y2))

    r1, r2 = reference_forward(x, w1, b1, g1, be1, g2, be2, w2, b2)
    assert y1.shape == (N, 1, H - 2, W - 2) and y2.shape == (N, 1, H - 4, W - 4)
    assert jnp.allclose(y1, r1, atol=1e-3, rtol=1e-3)
    assert jnp.allclose(y2, r2, atol=1e-3, rtol=1e-3)

    print("KERNEL_OK")
</pallas_src>

<mosaic_0001>
module attributes {stable_mosaic.version = 11 : i64} {
  func.func @kernel(%arg0: memref<3x768xf32, #tpu.memory_space<vmem>>, %arg1: memref<8x640xf32, #tpu.memory_space<vmem>>, %arg2: memref<2x512xf32, #tpu.memory_space<vmem>>, %arg3: memref<28x640xf32, #tpu.memory_space<vmem>>) attributes {dimension_semantics = [], scalar_prefetch = 0 : i64, scratch_operands = 1 : i64, tpu.core_type = #tpu.core_type<tc>} {
    %c0 = arith.constant 0 : index
    %c0_0 = arith.constant 0 : index
    %0 = vector.load %arg1[%c0, %c0_0] : memref<8x640xf32, #tpu.memory_space<vmem>>, vector<3x28xf32>
    %c0_1 = arith.constant 0 : index
    %c28 = arith.constant 28 : index
    %1 = vector.load %arg1[%c0_1, %c28] : memref<8x640xf32, #tpu.memory_space<vmem>>, vector<3x1xf32>
    %c0_2 = arith.constant 0 : index
    %c29 = arith.constant 29 : index
    %2 = vector.load %arg1[%c0_2, %c29] : memref<8x640xf32, #tpu.memory_space<vmem>>, vector<3x1xf32>
    %c0_3 = arith.constant 0 : index
    %c30 = arith.constant 30 : index
    %3 = vector.load %arg1[%c0_3, %c30] : memref<8x640xf32, #tpu.memory_space<vmem>>, vector<3x1xf32>
    %c0_4 = arith.constant 0 : index
    %c31 = arith.constant 31 : index
    %4 = vector.load %arg1[%c0_4, %c31] : memref<8x640xf32, #tpu.memory_space<vmem>>, vector<3x1xf32>
    %c0_5 = arith.constant 0 : index
    %c32 = arith.constant 32 : index
    %5 = vector.load %arg1[%c0_5, %c32] : memref<8x640xf32, #tpu.memory_space<vmem>>, vector<3x3xf32>
    %c3 = arith.constant 3 : index
    %c0_6 = arith.constant 0 : index
    %6 = vector.load %arg1[%c3, %c0_6] : memref<8x640xf32, #tpu.memory_space<vmem>>, vector<1x3xf32>
    %c3_7 = arith.constant 3 : index
    %c3_8 = arith.constant 3 : index
    %7 = vector.load %arg1[%c3_7, %c3_8] : memref<8x640xf32, #tpu.memory_space<vmem>>, vector<1x1xf32>
    %c4 = arith.constant 4 : index
    %c0_9 = arith.constant 0 : index
    %8 = vector.load %arg1[%c4, %c0_9] : memref<8x640xf32, #tpu.memory_space<vmem>>, vector<1x640xf32>
    %c5 = arith.constant 5 : index
    %c0_10 = arith.constant 0 : index
    %9 = vector.load %arg1[%c5, %c0_10] : memref<8x640xf32, #tpu.memory_space<vmem>>, vector<1x512xf32>
    %cst = arith.constant 1.000000e+00 : f32
    %10 = vector.broadcast %cst : f32 to vector<1x640xf32>
    %c27 = arith.constant 27 : index
    %c0_11 = arith.constant 0 : index
    %11 = vector.load %arg3[%c27, %c0_11] : memref<28x640xf32, #tpu.memory_space<vmem>>, vector<1x640xf32>
    tpu.vector_store %arg3[%c27, %c0_11], %10 {strides = array<i32>} : memref<28x640xf32, #tpu.memory_space<vmem>>, vector<1x640xf32>,
    %c0_12 = arith.constant 0 : index
    %c0_13 = arith.constant 0 : index
    %12 = vector.load %arg0[%c0_12, %c0_13] : memref<3x768xf32, #tpu.memory_space<vmem>>, vector<3x768xf32>
    %13 = vector.extract_strided_slice %12 {offsets = [0, 0], sizes = [3, 640], strides = [1, 1]} : vector<3x768xf32> to vector<3x640xf32>
    %c0_14 = arith.constant 0 : index
    %c0_15 = arith.constant 0 : index
    %14 = vector.load %arg3[%c0_14, %c0_15] : memref<28x640xf32, #tpu.memory_space<vmem>>, vector<3x640xf32>
    tpu.vector_store %arg3[%c0_14, %c0_15], %13 {strides = array<i32>} : memref<28x640xf32, #tpu.memory_space<vmem>>, vector<3x640xf32>,
    %15 = vector.extract_strided_slice %12 {offsets = [0, 1], sizes = [3, 640], strides = [1, 1]} : vector<3x768xf32> to vector<3x640xf32>
    %c3_16 = arith.constant 3 : index
    %c0_17 = arith.constant 0 : index
    %16 = vector.load %arg3[%c3_16, %c0_17] : memref<28x640xf32, #tpu.memory_space<vmem>>, vector<3x640xf32>
    tpu.vector_store %arg3[%c3_16, %c0_17], %15 {strides = array<i32>} : memref<28x640xf32, #tpu.memory_space<vmem>>, vector<3x640xf32>,
    %17 = vector.extract_strided_slice %12 {offsets = [0, 2], sizes = [3, 640], strides = [1, 1]} : vector<3x768xf32> to vector<3x640xf32>
    %c6 = arith.constant 6 : index
    %c0_18 = arith.constant 0 : index
    %18 = vector.load %arg3[%c6, %c0_18] : memref<28x640xf32, #tpu.memory_space<vmem>>, vector<3x640xf32>
    tpu.vector_store %arg3[%c6, %c0_18], %17 {strides = array<i32>} : memref<28x640xf32, #tpu.memory_space<vmem>>, vector<3x640xf32>,
    %19 = vector.extract_strided_slice %12 {offsets = [0, 16], sizes = [3, 640], strides = [1, 1]} : vector<3x768xf32> to vector<3x640xf32>
    %c9 = arith.constant 9 : index
    %c0_19 = arith.constant 0 : index
    %20 = vector.load %arg3[%c9, %c0_19] : memref<28x640xf32, #tpu.memory_space<vmem>>, vector<3x640xf32>
    tpu.vector_store %arg3[%c9, %c0_19], %19 {strides = array<i32>} : memref<28x640xf32, #tpu.memory_space<vmem>>, vector<3x640xf32>,
    %21 = vector.extract_strided_slice %12 {offsets = [0, 17], sizes = [3, 640], strides = [1, 1]} : vector<3x768xf32> to vector<3x640xf32>
    %c12 = arith.constant 12 : index
    %c0_20 = arith.constant 0 : index
    %22 = vector.load %arg3[%c12, %c0_20] : memref<28x640xf32, #tpu.memory_space<vmem>>, vector<3x640xf32>
    tpu.vector_store %arg3[%c12, %c0_20], %21 {strides = array<i32>} : memref<28x640xf32, #tpu.memory_space<vmem>>, vector<3x640xf32>,
    %23 = vector.extract_strided_slice %12 {offsets = [0, 18], sizes = [3, 640], strides = [1, 1]} : vector<3x768xf32> to vector<3x640xf32>
    %c15 = arith.constant 15 : index
    %c0_21 = arith.constant 0 : index
    %24 = vector.load %arg3[%c15, %c0_21] : memref<28x640xf32, #tpu.memory_space<vmem>>, vector<3x640xf32>
    tpu.vector_store %arg3[%c15, %c0_21], %23 {strides = array<i32>} : memref<28x640xf32, #tpu.memory_space<vmem>>, vector<3x640xf32>,
    %25 = vector.extract_strided_slice %12 {offsets = [0, 32], sizes = [3, 640], strides = [1, 1]} : vector<3x768xf32> to vector<3x640xf32>
    %c18 = arith.constant 18 : index
    %c0_22 = arith.constant 0 : index
    %26 = vector.load %arg3[%c18, %c0_22] : memref<28x640xf32, #tpu.memory_space<vmem>>, vector<3x640xf32>
    tpu.vector_store %arg3[%c18, %c0_22], %25 {strides = array<i32>} : memref<28x640xf32, #tpu.memory_space<vmem>>, vector<3x640xf32>,
    %27 = vector.extract_strided_slice %12 {offsets = [0, 33], sizes = [3, 640], strides = [1, 1]} : vector<3x768xf32> to vector<3x640xf32>
    %c21 = arith.constant 21 : index
    %c0_23 = arith.constant 0 : index
    %28 = vector.load %arg3[%c21, %c0_23] : memref<28x640xf32, #tpu.memory_space<vmem>>, vector<3x640xf32>
    tpu.vector_store %arg3[%c21, %c0_23], %27 {strides = array<i32>} : memref<28x640xf32, #tpu.memory_space<vmem>>, vector<3x640xf32>,
    %29 = vector.extract_strided_slice %12 {offsets = [0, 34], sizes = [3, 640], strides = [1, 1]} : vector<3x768xf32> to vector<3x640xf32>
    %c24 = arith.constant 24 : index
    %c0_24 = arith.constant 0 : index
    %30 = vector.load %arg3[%c24, %c0_24] : memref<28x640xf32, #tpu.memory_space<vmem>>, vector<3x640xf32>
    tpu.vector_store %arg3[%c24, %c0_24], %29 {strides = array<i32>} : memref<28x640xf32, #tpu.memory_space<vmem>>, vector<3x640xf32>,
    %c0_25 = arith.constant 0 : index
    %c0_26 = arith.constant 0 : index
    %31 = vector.load %arg3[%c0_25, %c0_26] : memref<28x640xf32, #tpu.memory_space<vmem>>, vector<28x640xf32>
    %cst_27 = arith.constant dense<0.000000e+00> : vector<3x640xf32>
    %32 = tpu.matmul %0, %31, %cst_27 {dimension_numbers = #tpu.dot_dimension_numbers<[1], [0], [0], [1], [0, 0, 1, 1], [], []>} : vector<3x28xf32>, vector<28x640xf32>, vector<3x640xf32> -> vector<3x640xf32>
    %33 = vector.extract_strided_slice %32 {offsets = [0, 0], sizes = [3, 512], strides = [1, 1]} : vector<3x640xf32> to vector<3x512xf32>
    %c0_28 = arith.constant 0 : index
    %c0_29 = arith.constant 0 : index
    %34 = vector.load %arg3[%c0_28, %c0_29] : memref<28x640xf32, #tpu.memory_space<vmem>>, vector<3x512xf32>
    tpu.vector_store %arg3[%c0_28, %c0_29], %33 {strides = array<i32>} : memref<28x640xf32, #tpu.memory_space<vmem>>, vector<3x512xf32>,
    %35 = vector.extract_strided_slice %32 {offsets = [0, 1], sizes = [3, 512], strides = [1, 1]} : vector<3x640xf32> to vector<3x512xf32>
    %c3_30 = arith.constant 3 : index
    %c0_31 = arith.constant 0 : index
    %36 = vector.load %arg3[%c3_30, %c0_31] : memref<28x640xf32, #tpu.memory_space<vmem>>, vector<3x512xf32>
    tpu.vector_store %arg3[%c3_30, %c0_31], %35 {strides = array<i32>} : memref<28x640xf32, #tpu.memory_space<vmem>>, vector<3x512xf32>,
    %37 = vector.extract_strided_slice %32 {offsets = [0, 2], sizes = [3, 512], strides = [1, 1]} : vector<3x640xf32> to vector<3x512xf32>
    %c6_32 = arith.constant 6 : index
    %c0_33 = arith.constant 0 : index
    %38 = vector.load %arg3[%c6_32, %c0_33] : memref<28x640xf32, #tpu.memory_space<vmem>>, vector<3x512xf32>
    tpu.vector_store %arg3[%c6_32, %c0_33], %37 {strides = array<i32>} : memref<28x640xf32, #tpu.memory_space<vmem>>, vector<3x512xf32>,
    %39 = vector.extract_strided_slice %32 {offsets = [0, 16], sizes = [3, 512], strides = [1, 1]} : vector<3x640xf32> to vector<3x512xf32>
    %c9_34 = arith.constant 9 : index
    %c0_35 = arith.constant 0 : index
    %40 = vector.load %arg3[%c9_34, %c0_35] : memref<28x640xf32, #tpu.memory_space<vmem>>, vector<3x512xf32>
    tpu.vector_store %arg3[%c9_34, %c0_35], %39 {strides = array<i32>} : memref<28x640xf32, #tpu.memory_space<vmem>>, vector<3x512xf32>,
    %41 = vector.extract_strided_slice %32 {offsets = [0, 17], sizes = [3, 512], strides = [1, 1]} : vector<3x640xf32> to vector<3x512xf32>
    %c12_36 = arith.constant 12 : index
    %c0_37 = arith.constant 0 : index
    %42 = vector.load %arg3[%c12_36, %c0_37] : memref<28x640xf32, #tpu.memory_space<vmem>>, vector<3x512xf32>
    tpu.vector_store %arg3[%c12_36, %c0_37], %41 {strides = array<i32>} : memref<28x640xf32, #tpu.memory_space<vmem>>, vector<3x512xf32>,
    %43 = vector.extract_strided_slice %32 {offsets = [0, 18], sizes = [3, 512], strides = [1, 1]} : vector<3x640xf32> to vector<3x512xf32>
    %c15_38 = arith.constant 15 : index
    %c0_39 = arith.constant 0 : index
    %44 = vector.load %arg3[%c15_38, %c0_39] : memref<28x640xf32, #tpu.memory_space<vmem>>, vector<3x512xf32>
    tpu.vector_store %arg3[%c15_38, %c0_39], %43 {strides = array<i32>} : memref<28x640xf32, #tpu.memory_space<vmem>>, vector<3x512xf32>,
    %45 = vector.extract_strided_slice %32 {offsets = [0, 32], sizes = [3, 512], strides = [1, 1]} : vector<3x640xf32> to vector<3x512xf32>
    %c18_40 = arith.constant 18 : index
    %c0_41 = arith.constant 0 : index
    %46 = vector.load %arg3[%c18_40, %c0_41] : memref<28x640xf32, #tpu.memory_space<vmem>>, vector<3x512xf32>
    tpu.vector_store %arg3[%c18_40, %c0_41], %45 {strides = array<i32>} : memref<28x640xf32, #tpu.memory_space<vmem>>, vector<3x512xf32>,
    %47 = vector.extract_strided_slice %32 {offsets = [0, 33], sizes = [3, 512], strides = [1, 1]} : vector<3x640xf32> to vector<3x512xf32>
    %c21_42 = arith.constant 21 : index
    %c0_43 = arith.constant 0 : index
    %48 = vector.load %arg3[%c21_42, %c0_43] : memref<28x640xf32, #tpu.memory_space<vmem>>, vector<3x512xf32>
    tpu.vector_store %arg3[%c21_42, %c0_43], %47 {strides = array<i32>} : memref<28x640xf32, #tpu.memory_space<vmem>>, vector<3x512xf32>,
    %49 = vector.extract_strided_slice %32 {offsets = [0, 34], sizes = [3, 512], strides = [1, 1]} : vector<3x640xf32> to vector<3x512xf32>
    %c24_44 = arith.constant 24 : index
    %c0_45 = arith.constant 0 : index
    %50 = vector.load %arg3[%c24_44, %c0_45] : memref<28x640xf32, #tpu.memory_space<vmem>>, vector<3x512xf32>
    tpu.vector_store %arg3[%c24_44, %c0_45], %49 {strides = array<i32>} : memref<28x640xf32, #tpu.memory_space<vmem>>, vector<3x512xf32>,
    %c0_46 = arith.constant 0 : index
    %c0_47 = arith.constant 0 : index
    %51 = vector.load %arg3[%c0_46, %c0_47] : memref<28x640xf32, #tpu.memory_space<vmem>>, vector<28x512xf32>
    %cst_48 = arith.constant dense<0.000000e+00> : vector<3x512xf32>
    %52 = tpu.matmul %0, %51, %cst_48 {dimension_numbers = #tpu.dot_dimension_numbers<[1], [0], [0], [1], [0, 0, 1, 1], [], []>} : vector<3x28xf32>, vector<28x512xf32>, vector<3x512xf32> -> vector<3x512xf32>
    %53 = vector.broadcast %8 : vector<1x640xf32> to vector<3x640xf32>
    %54 = arith.mulf %32, %53 : vector<3x640xf32>
    %cst_49 = arith.constant dense<0.000000e+00> : vector<3xf32>
    %55 = vector.multi_reduction <add>, %54, %cst_49 [1] : vector<3x640xf32> to vector<3xf32>
    %56 = vector.shape_cast %55 : vector<3xf32> to vector<3x1xf32>
    %cst_50 = arith.constant 0.00255102036 : f32
    %57 = vector.broadcast %cst_50 : f32 to vector<3x1xf32>
    %58 = arith.mulf %56, %57 : vector<3x1xf32>
    %59 = arith.mulf %54, %32 : vector<3x640xf32>
    %cst_51 = arith.constant dense<0.000000e+00> : vector<3xf32>
    %60 = vector.multi_reduction <add>, %59, %cst_51 [1] : vector<3x640xf32> to vector<3xf32>
    %61 = vector.shape_cast %60 : vector<3xf32> to vector<3x1xf32>
    %cst_52 = arith.constant 0.00255102036 : f32
    %62 = vector.broadcast %cst_52 : f32 to vector<3x1xf32>
    %63 = arith.mulf %61, %62 : vector<3x1xf32>
    %64 = arith.mulf %58, %58 : vector<3x1xf32>
    %65 = arith.subf %63, %64 : vector<3x1xf32>
    %cst_53 = arith.constant 9.99999974E-6 : f32
    %66 = vector.broadcast %cst_53 : f32 to vector<3x1xf32>
    %67 = arith.addf %65, %66 : vector<3x1xf32>
    %68 = math.rsqrt %67 : vector<3x1xf32>
    %69 = arith.mulf %1, %68 : vector<3x1xf32>
    %70 = arith.mulf %69, %58 : vector<3x1xf32>
    %71 = arith.subf %2, %70 : vector<3x1xf32>
    %72 = vector.broadcast %9 : vector<1x512xf32> to vector<3x512xf32>
    %73 = arith.mulf %52, %72 : vector<3x512xf32>
    %cst_54 = arith.constant dense<0.000000e+00> : vector<3xf32>
    %74 = vector.multi_reduction <add>, %73, %cst_54 [1] : vector<3x512xf32> to vector<3xf32>
    %75 = vector.shape_cast %74 : vector<3xf32> to vector<3x1xf32>
    %cst_55 = arith.constant 0.00347222225 : f32
    %76 = vector.broadcast %cst_55 : f32 to vector<3x1xf32>
    %77 = arith.mulf %75, %76 : vector<3x1xf32>
    %78 = arith.mulf %73, %52 : vector<3x512xf32>
    %cst_56 = arith.constant dense<0.000000e+00> : vector<3xf32>
    %79 = vector.multi_reduction <add>, %78, %cst_56 [1] : vector<3x512xf32> to vector<3xf32>
    %80 = vector.shape_cast %79 : vector<3xf32> to vector<3x1xf32>
    %cst_57 = arith.constant 0.00347222225 : f32
    %81 = vector.broadcast %cst_57 : f32 to vector<3x1xf32>
    %82 = arith.mulf %80, %81 : vector<3x1xf32>
    %83 = arith.mulf %77, %77 : vector<3x1xf32>
    %84 = arith.subf %82, %83 : vector<3x1xf32>
    %cst_58 = arith.constant 9.99999974E-6 : f32
    %85 = vector.broadcast %cst_58 : f32 to vector<3x1xf32>
    %86 = arith.addf %84, %85 : vector<3x1xf32>
    %87 = math.rsqrt %86 : vector<3x1xf32>
    %88 = arith.mulf %3, %87 : vector<3x1xf32>
    %89 = arith.mulf %88, %77 : vector<3x1xf32>
    %90 = arith.subf %4, %89 : vector<3x1xf32>
    %91 = vector.broadcast %69 : vector<3x1xf32> to vector<3x3xf32>
    %92 = arith.mulf %91, %5 : vector<3x3xf32>
    %cst_59 = arith.constant dense<0.000000e+00> : vector<1x3xf32>
    %93 = tpu.matmul %6, %92, %cst_59 {dimension_numbers = #tpu.dot_dimension_numbers<[1], [0], [0], [1], [0, 0, 1, 1], [], []>} : vector<1x3xf32>, vector<3x3xf32>, vector<1x3xf32> -> vector<1x3xf32>
    %94 = vector.broadcast %88 : vector<3x1xf32> to vector<3x3xf32>
    %95 = arith.mulf %94, %5 : vector<3x3xf32>
    %cst_60 = arith.constant dense<0.000000e+00> : vector<1x3xf32>
    %96 = tpu.matmul %6, %95, %cst_60 {dimension_numbers = #tpu.dot_dimension_numbers<[1], [0], [0], [1], [0, 0, 1, 1], [], []>} : vector<1x3xf32>, vector<3x3xf32>, vector<1x3xf32> -> vector<1x3xf32>
    %cst_61 = arith.constant dense<0.000000e+00> : vector<1x1xf32>
    %97 = tpu.matmul %6, %71, %cst_61 {dimension_numbers = #tpu.dot_dimension_numbers<[1], [0], [0], [1], [0, 0, 1, 1], [], []>} : vector<1x3xf32>, vector<3x1xf32>, vector<1x1xf32> -> vector<1x1xf32>
    %98 = arith.addf %7, %97 : vector<1x1xf32>
    %cst_62 = arith.constant dense<0.000000e+00> : vector<1x1xf32>
    %99 = tpu.matmul %6, %90, %cst_62 {dimension_numbers = #tpu.dot_dimension_numbers<[1], [0], [0], [1], [0, 0, 1, 1], [], []>} : vector<1x3xf32>, vector<3x1xf32>, vector<1x1xf32> -> vector<1x1xf32>
    %100 = arith.addf %7, %99 : vector<1x1xf32>
    %101 = vector.extract_strided_slice %32 {offsets = [0, 0], sizes = [3, 512], strides = [1, 1]} : vector<3x640xf32> to vector<3x512xf32>
    %cst_63 = arith.constant dense<0.000000e+00> : vector<1x512xf32>
    %102 = tpu.matmul %93, %101, %cst_63 {dimension_numbers = #tpu.dot_dimension_numbers<[1], [0], [0], [1], [0, 0, 1, 1], [], []>} : vector<1x3xf32>, vector<3x512xf32>, vector<1x512xf32> -> vector<1x512xf32>
    %103 = vector.broadcast %98 : vector<1x1xf32> to vector<1x512xf32>
    %104 = arith.addf %102, %103 : vector<1x512xf32>
    %c0_64 = arith.constant 0 : index
    %c0_65 = arith.constant 0 : index
    %105 = vector.load %arg2[%c0_64, %c0_65] : memref<2x512xf32, #tpu.memory_space<vmem>>, vector<1x512xf32>
    tpu.vector_store %arg2[%c0_64, %c0_65], %104 {strides = array<i32>} : memref<2x512xf32, #tpu.memory_space<vmem>>, vector<1x512xf32>,
    %cst_66 = arith.constant dense<0.000000e+00> : vector<1x512xf32>
    %106 = tpu.matmul %96, %52, %cst_66 {dimension_numbers = #tpu.dot_dimension_numbers<[1], [0], [0], [1], [0, 0, 1, 1], [], []>} : vector<1x3xf32>, vector<3x512xf32>, vector<1x512xf32> -> vector<1x512xf32>
    %107 = vector.broadcast %100 : vector<1x1xf32> to vector<1x512xf32>
    %108 = arith.addf %106, %107 : vector<1x512xf32>
    %c1 = arith.constant 1 : index
    %c0_67 = arith.constant 0 : index
    %109 = vector.load %arg2[%c1, %c0_67] : memref<2x512xf32, #tpu.memory_space<vmem>>, vector<1x512xf32>
    tpu.vector_store %arg2[%c1, %c0_67], %108 {strides = array<i32>} : memref<2x512xf32, #tpu.memory_space<vmem>>, vector<1x512xf32>,
    return
  }
}

</mosaic_0001>

<llo_original>
// kernel: tpu_custom_call.1
$region0: #{tpu_custom_call.1}
  #allocation0 [shape = 'u32[]', space=smem, size = 0x4, offset = 0x4, fixed_abs, tag = 'smem constant byte address 0x4 - core index']
  #allocation1 [shape = 'u32[72,128]{1,0:T(1,128)}', space=vmem, size = 0x9000, scoped, tag = 'internal scratch']
  #allocation2 [shape = 'f32[28,640]{1,0:T(8,128)}', space=vmem, size = 0x14000, scoped, tag = 'scratch operand']
  %s0 = inlined_call_operand.hbm [shape: f32[3,768], index: 0, kind: input, shape index: {}]
  %s1 = inlined_call_operand.hbm [shape: f32[8,640], index: 1, kind: input, shape index: {}]
  %s2 = inlined_call_operand.hbm [shape: f32[2,512], index: 2, kind: output, shape index: {}]
  %s3 = sld [smem:[#allocation0]]
  $region26: #{tpu_custom_call.1} parent=0
    _
  %s5 = ssub.s32 1, %s3
  %s6 = scalar_select 0, %s5, %s3
  $region1: #{tpu_custom_call.1} parent=0
    #allocation3 [shape = 'u8[12288]{0}', space=vmem, size = 0x3000, scoped, tag = 'input window, operand 0, single buffered']
    #allocation4 [shape = 's32[1]{0}', space=sflag, size = 0x4, scoped, tag = 'scoped memory for tpu_custom_call.1']
    #allocation5 [shape = 's32[1]{0}', space=sflag, size = 0x4, scoped, tag = 'scoped memory for tpu_custom_call.1']
    #allocation6 [shape = 'u8[20480]{0}', space=vmem, size = 0x5000, scoped, tag = 'input window, operand 1, single buffered']
    #allocation7 [shape = 's32[1]{0}', space=sflag, size = 0x4, scoped, tag = 'scoped memory for tpu_custom_call.1']
    #allocation8 [shape = 'u8[4096]{0}', space=vmem, size = 0x1000, scoped, tag = 'output window, operand 0, single buffered']
    %7 = vsyncpa [#allocation4], 0
    %8 = vsyncpa [#allocation7], 0
    %9 = vsyncpa [#allocation5], 0
    // Predicated region
    $region2: #{tpu_custom_call.1} parent=1 // pred_check
      _
    $region3: #{tpu_custom_call.1} parent=1 // pred_check_branch
      %11 = sbr.rel (0) target = $region5
    $region4: #{tpu_custom_call.1} parent=1 // pred_region
      %13 = vsyncadd [#allocation4], 0
      %s15 = sshll.u32 %s0, 4
      %s16 = int_to_ptr.hbm [resolvable:$true] %s15
      %s17 = sshll.u32 [#allocation3], 4
      %s18 = int_to_ptr.vmem [resolvable:$true] %s17
      %20 = dma.hbm_to_vmem [thread:$0]  %s16, 384, %s18, [#allocation4]
    $region5: #{tpu_custom_call.1} parent=1 // pred_fallthru
      _
    // Predicated region
    $region6: #{tpu_custom_call.1} parent=1 // pred_check
      _
    $region7: #{tpu_custom_call.1} parent=1 // pred_check_branch
      %22 = sbr.rel (0) target = $region9
    $region8: #{tpu_custom_call.1} parent=1 // pred_region
      %24 = vsyncadd [#allocation7], 0
      %s26 = sshll.u32 %s1, 4
      %s27 = int_to_ptr.hbm [resolvable:$true] %s26
      %s28 = sshll.u32 [#allocation6], 4
      %s29 = int_to_ptr.vmem [resolvable:$true] %s28
      %31 = dma.hbm_to_vmem [thread:$0]  %s27, 640, %s29, [#allocation7]
    $region9: #{tpu_custom_call.1} parent=1 // pred_fallthru
      _
    // Predicated region
    $region10: #{tpu_custom_call.1} parent=1 // pred_check
      _
    $region11: #{tpu_custom_call.1} parent=1 // pred_check_branch
      %33 = sbr.rel (0) target = $region13
    $region12: #{tpu_custom_call.1} parent=1 // pred_region
      %35 = dma.done [#allocation4], 384
    $region13: #{tpu_custom_call.1} parent=1 // pred_fallthru
      _
    // Predicated region
    $region14: #{tpu_custom_call.1} parent=1 // pred_check
      _
    $region15: #{tpu_custom_call.1} parent=1 // pred_check_branch
      %37 = sbr.rel (0) target = $region17
    $region16: #{tpu_custom_call.1} parent=1 // pred_region
      %39 = dma.done [#allocation7], 640
    $region17: #{tpu_custom_call.1} parent=1 // pred_fallthru
      _
    %v40 = vld [vmem:[#allocation6] sm:$0x7]
    %v41 = vld [vmem:[#allocation6 + $0x3] ss:$0 sm:$0xff]
    %s42 = scalar_lea.vmem [#allocation6], 4
    %v43 = vld [vmem:[%s42] ss:$8 sm:$0xf]
    %v44 = vld [vmem:[%s42] ss:$8 sm:$0x10]
    %v45 = vor.u32 %v43, %v44
    %s46 = scalar_lea.vmem [#allocation6], 5
    %v47 = vld [vmem:[%s46] ss:$8 sm:$0xf]
    %v48 = vlaneseq
    %vm49 = vcmp.ge.s32.totalorder %v48, 0
    %vm50 = vcmp.lt.s32.totalorder %v48, 640
    %vm51 = vmand %vm49, %vm50
    %s52 = scalar_lea.vmem [#allocation2], 123
    %53 = vst.msk [vmem:[%s52] ss:$8 sm:$0xf] %vm51, 1.0
    %54 = vst.msk [vmem:[%s52] ss:$8 sm:$0x10] %vm51, 1.0
    %v55 = vld [vmem:[#allocation3] sm:$0x77]
    %v56 = vld [vmem:[#allocation3 + $0x8] sm:$0x77]
    %v57 = vld [vmem:[#allocation3 + $0x10] sm:$0x77]
    %61 = vst [vmem:[#allocation1] ss:$2 sm:$0xff] %v55
    %s62 = scalar_lea.vmem [#allocation1], 16
    %63 = vst [vmem:[%s62] ss:$2 sm:$0xff] %v56
    %s64 = scalar_lea.vmem [#allocation1], 32
    %65 = vst [vmem:[%s64] ss:$2 sm:$0xff] %v57
    %v66 = vld.sshfl [vmem:[#allocation1] sm:$0xff pattern:$0x75316420]
    %v67 = vld.sshfl [vmem:[#allocation1 + $0x8] sm:$0xff pattern:$0x75316420]
    %v68 = vld.sshfl [vmem:[#allocation1 + $0x10] sm:$0xff pattern:$0x75316420]
    %v69 = vld.sshfl [vmem:[#allocation1 + $0x18] sm:$0xff pattern:$0x75316420]
    %v70 = vld.sshfl [vmem:[#allocation1 + $0x20] sm:$0xff pattern:$0x75316420]
    %76 = vst [vmem:[#allocation2] sm:$0x7] %v66
    %77 = vst [vmem:[#allocation2 + $0x8] sm:$0x7] %v67
    %78 = vst [vmem:[#allocation2 + $0x10] sm:$0x7] %v68
    %79 = vst [vmem:[#allocation2 + $0x18] sm:$0x7] %v69
    %80 = vst [vmem:[#allocation2 + $0x20] sm:$0x7] %v70
    %81 = vst [vmem:[#allocation1] ss:$2 sm:$0xff] %v55
    %s82 = scalar_lea.vmem [#allocation1], 16
    %83 = vst [vmem:[%s82] ss:$2 sm:$0xff] %v56
    %s84 = scalar_lea.vmem [#allocation1], 32
    %85 = vst [vmem:[%s84] ss:$2 sm:$0xff] %v57
    %v86 = vld.sshfl [vmem:[#allocation1] sm:$0xff pattern:$0x75316420]
    %v87 = vld.sshfl [vmem:[#allocation1 + $0x8] sm:$0xff pattern:$0x75316420]
    %v88 = vld.sshfl [vmem:[#allocation1 + $0x10] sm:$0xff pattern:$0x75316420]
    %v89 = vld.sshfl [vmem:[#allocation1 + $0x18] sm:$0xff pattern:$0x75316420]
    %v90 = vld.sshfl [vmem:[#allocation1 + $0x20] sm:$0xff pattern:$0x75316420]
    %v91 = vld.sshfl [vmem:[#allocation1 + $0x28] sm:$0xff pattern:$0x75316420]
    %v92 = vrot.slane %v86, 5
    %v93 = vrot.slane %v87, 5
    %v94 = vrot.slane %v88, 5
    %v95 = vrot.slane %v89, 5
    %v96 = vrot.slane %v90, 5
    %v97 = vrot.slane %v91, 5
    %98 = vrot.lane.b32.xlu0 %v92, 127
    %v99 = vpop.permute.xlu0 %98
    %100 = vrot.lane.b32.xlu0 %v93, 127
    %v101 = vpop.permute.xlu0 %100
    %102 = vrot.lane.b32.xlu0 %v94, 127
    %v103 = vpop.permute.xlu0 %102
    %104 = vrot.lane.b32.xlu0 %v95, 127
    %v105 = vpop.permute.xlu0 %104
    %106 = vrot.lane.b32.xlu0 %v96, 127
    %v107 = vpop.permute.xlu0 %106
    %108 = vrot.lane.b32.xlu0 %v97, 127
    %v109 = vpop.permute.xlu0 %108
    %vm110 = vcmask 1039360
    %v111 = vsel %vm110, %v99, %v101
    %v112 = vsel %vm110, %v101, %v103
    %v113 = vsel %vm110, %v103, %v105
    %v114 = vsel %vm110, %v105, %v107
    %v115 = vsel %vm110, %v107, %v109
    %121 = vst [vmem:[#allocation2] sm:$0x38] %v111
    %122 = vst [vmem:[#allocation2 + $0x8] sm:$0x38] %v112
    %123 = vst [vmem:[#allocation2 + $0x10] sm:$0x38] %v113
    %124 = vst [vmem:[#allocation2 + $0x18] sm:$0x38] %v114
    %125 = vst [vmem:[#allocation2 + $0x20] sm:$0x38] %v115
    %126 = vst [vmem:[#allocation1] ss:$2 sm:$0xff] %v55
    %s127 = scalar_lea.vmem [#allocation1], 16
    %128 = vst [vmem:[%s127] ss:$2 sm:$0xff] %v56
    %s129 = scalar_lea.vmem [#allocation1], 32
    %130 = vst [vmem:[%s129] ss:$2 sm:$0xff] %v57
    %v131 = vld.sshfl [vmem:[#allocation1] sm:$0xff pattern:$0x75316420]
    %v132 = vld.sshfl [vmem:[#allocation1 + $0x8] sm:$0xff pattern:$0x75316420]
    %v133 = vld.sshfl [vmem:[#allocation1 + $0x10] sm:$0xff pattern:$0x75316420]
    %v134 = vld.sshfl [vmem:[#allocation1 + $0x18] sm:$0xff pattern:$0x75316420]
    %v135 = vld.sshfl [vmem:[#allocation1 + $0x20] sm:$0xff pattern:$0x75316420]
    %v136 = vld.sshfl [vmem:[#allocation1 + $0x28] sm:$0xff pattern:$0x75316420]
    %v137 = vrot.slane %v131, 2
    %v138 = vrot.slane %v132, 2
    %v139 = vrot.slane %v133, 2
    %v140 = vrot.slane %v134, 2
    %v141 = vrot.slane %v135, 2
    %v142 = vrot.slane %v136, 2
    %143 = vrot.lane.b32.xlu0 %v137, 126
    %v144 = vpop.permute.xlu0 %143
    %145 = vrot.lane.b32.xlu0 %v138, 126
    %v146 = vpop.permute.xlu0 %145
    %147 = vrot.lane.b32.xlu0 %v139, 126
    %v148 = vpop.permute.xlu0 %147
    %149 = vrot.lane.b32.xlu0 %v140, 126
    %v150 = vpop.permute.xlu0 %149
    %151 = vrot.lane.b32.xlu0 %v141, 126
    %v152 = vpop.permute.xlu0 %151
    %153 = vrot.lane.b32.xlu0 %v142, 126
    %v154 = vpop.permute.xlu0 %153
    %vm155 = vcmask 1031168
    %v156 = vsel %vm155, %v144, %v146
    %v157 = vsel %vm155, %v146, %v148
    %v158 = vsel %vm155, %v148, %v150
    %v159 = vsel %vm155, %v150, %v152
    %v160 = vsel %vm155, %v152, %v154
    %166 = vst [vmem:[#allocation2] sm:$0xc0] %v156
    %167 = vst [vmem:[#allocation2 + $0x8] sm:$0xc0] %v157
    %168 = vst [vmem:[#allocation2 + $0x10] sm:$0xc0] %v158
    %169 = vst [vmem:[#allocation2 + $0x18] sm:$0xc0] %v159
    %170 = vst [vmem:[#allocation2 + $0x20] sm:$0xc0] %v160
    %171 = vst [vmem:[#allocation2 + $0x28] sm:$0x1] %v156
    %172 = vst [vmem:[#allocation2 + $0x30] sm:$0x1] %v157
    %173 = vst [vmem:[#allocation2 + $0x38] sm:$0x1] %v158
    %174 = vst [vmem:[#allocation2 + $0x40] sm:$0x1] %v159
    %175 = vst [vmem:[#allocation2 + $0x48] sm:$0x1] %v160
    %176 = vst [vmem:[#allocation1] ss:$2 sm:$0xff] %v55
    %s177 = scalar_lea.vmem [#allocation1], 16
    %178 = vst [vmem:[%s177] ss:$2 sm:$0xff] %v56
    %s179 = scalar_lea.vmem [#allocation1], 32
    %180 = vst [vmem:[%s179] ss:$2 sm:$0xff] %v57
    %v181 = vld.sshfl [vmem:[#allocation1] sm:$0xff pattern:$0x75316420]
    %v182 = vld.sshfl [vmem:[#allocation1 + $0x8] sm:$0xff pattern:$0x75316420]
    %v183 = vld.sshfl [vmem:[#allocation1 + $0x10] sm:$0xff pattern:$0x75316420]
    %v184 = vld.sshfl [vmem:[#allocation1 + $0x18] sm:$0xff pattern:$0x75316420]
    %v185 = vld.sshfl [vmem:[#allocation1 + $0x20] sm:$0xff pattern:$0x75316420]
    %v186 = vld.sshfl [vmem:[#allocation1 + $0x28] sm:$0xff pattern:$0x75316420]
    %v187 = vrot.slane %v181, 7
    %v188 = vrot.slane %v182, 7
    %v189 = vrot.slane %v183, 7
    %v190 = vrot.slane %v184, 7
    %v191 = vrot.slane %v185, 7
    %v192 = vrot.slane %v186, 7
    %193 = vrot.lane.b32.xlu0 %v187, 112
    %v194 = vpop.permute.xlu0 %193
    %195 = vrot.lane.b32.xlu0 %v188, 112
    %v196 = vpop.permute.xlu0 %195
    %197 = vrot.lane.b32.xlu0 %v189, 112
    %v198 = vpop.permute.xlu0 %197
    %199 = vrot.lane.b32.xlu0 %v190, 112
    %v200 = vpop.permute.xlu0 %199
    %201 = vrot.lane.b32.xlu0 %v191, 112
    %v202 = vpop.permute.xlu0 %201
    %203 = vrot.lane.b32.xlu0 %v192, 112
    %v204 = vpop.permute.xlu0 %203
    %vm205 = vcmask 916480
    %v206 = vsel %vm205, %v194, %v196
    %v207 = vsel %vm205, %v196, %v198
    %v208 = vsel %vm205, %v198, %v200
    %v209 = vsel %vm205, %v200, %v202
    %v210 = vsel %vm205, %v202, %v204
    %216 = vst [vmem:[#allocation2 + $0x28] sm:$0xe] %v206
    %217 = vst [vmem:[#allocation2 + $0x30] sm:$0xe] %v207
    %218 = vst [vmem:[#allocation2 + $0x38] sm:$0xe] %v208
    %219 = vst [vmem:[#allocation2 + $0x40] sm:$0xe] %v209
    %220 = vst [vmem:[#allocation2 + $0x48] sm:$0xe] %v210
    %s221 = scalar_lea.vmem [#allocation1], 1
    %222 = vst [vmem:[%s221] ss:$2 sm:$0xff] %v55
    %s223 = scalar_lea.vmem [#allocation1], 17
    %224 = vst [vmem:[%s223] ss:$2 sm:$0xff] %v56
    %s225 = scalar_lea.vmem [#allocation1], 33
    %226 = vst [vmem:[%s225] ss:$2 sm:$0xff] %v57
    %v227 = vld.sshfl [vmem:[#allocation1] sm:$0xff pattern:$0x75316420]
    %v228 = vld.sshfl [vmem:[#allocation1 + $0x8] sm:$0xff pattern:$0x75316420]
    %v229 = vld.sshfl [vmem:[#allocation1 + $0x10] sm:$0xff pattern:$0x75316420]
    %v230 = vld.sshfl [vmem:[#allocation1 + $0x18] sm:$0xff pattern:$0x75316420]
    %v231 = vld.sshfl [vmem:[#allocation1 + $0x20] sm:$0xff pattern:$0x75316420]
    %v232 = vld.sshfl [vmem:[#allocation1 + $0x28] sm:$0xff pattern:$0x75316420]
    %233 = vrot.lane.b32.xlu0 %v227, 111
    %v234 = vpop.permute.xlu0 %233
    %235 = vrot.lane.b32.xlu0 %v228, 111
    %v236 = vpop.permute.xlu0 %235
    %237 = vrot.lane.b32.xlu0 %v229, 111
    %v238 = vpop.permute.xlu0 %237
    %239 = vrot.lane.b32.xlu0 %v230, 111
    %v240 = vpop.permute.xlu0 %239
    %241 = vrot.lane.b32.xlu0 %v231, 111
    %v242 = vpop.permute.xlu0 %241
    %243 = vrot.lane.b32.xlu0 %v232, 111
    %v244 = vpop.permute.xlu0 %243
    %vm245 = vcmask 908288
    %v246 = vsel %vm245, %v234, %v236
    %v247 = vsel %vm245, %v236, %v238
    %v248 = vsel %vm245, %v238, %v240
    %v249 = vsel %vm245, %v240, %v242
    %v250 = vsel %vm245, %v242, %v244
    %256 = vst [vmem:[#allocation2 + $0x28] sm:$0x70] %v246
    %257 = vst [vmem:[#allocation2 + $0x30] sm:$0x70] %v247
    %258 = vst [vmem:[#allocation2 + $0x38] sm:$0x70] %v248
    %259 = vst [vmem:[#allocation2 + $0x40] sm:$0x70] %v249
    %260 = vst [vmem:[#allocation2 + $0x48] sm:$0x70] %v250
    %261 = vst [vmem:[#allocation1] ss:$2 sm:$0xff] %v55
    %s262 = scalar_lea.vmem [#allocation1], 16
    %263 = vst [vmem:[%s262] ss:$2 sm:$0xff] %v56
    %s264 = scalar_lea.vmem [#allocation1], 32
    %265 = vst [vmem:[%s264] ss:$2 sm:$0xff] %v57
    %v266 = vld.sshfl [vmem:[#allocation1] sm:$0xff pattern:$0x75316420]
    %v267 = vld.sshfl [vmem:[#allocation1 + $0x8] sm:$0xff pattern:$0x75316420]
    %v268 = vld.sshfl [vmem:[#allocation1 + $0x10] sm:$0xff pattern:$0x75316420]
    %v269 = vld.sshfl [vmem:[#allocation1 + $0x18] sm:$0xff pattern:$0x75316420]
    %v270 = vld.sshfl [vmem:[#allocation1 + $0x20] sm:$0xff pattern:$0x75316420]
    %v271 = vld.sshfl [vmem:[#allocation1 + $0x28] sm:$0xff pattern:$0x75316420]
    %v272 = vrot.slane %v266, 1
    %v273 = vrot.slane %v267, 1
    %v274 = vrot.slane %v268, 1
    %v275 = vrot.slane %v269, 1
    %v276 = vrot.slane %v270, 1
    %v277 = vrot.slane %v271, 1
    %278 = vrot.lane.b32.xlu0 %v272, 110
    %v279 = vpop.permute.xlu0 %278
    %280 = vrot.lane.b32.xlu0 %v273, 110
    %v281 = vpop.permute.xlu0 %280
    %282 = vrot.lane.b32.xlu0 %v274, 110
    %v283 = vpop.permute.xlu0 %282
    %284 = vrot.lane.b32.xlu0 %v275, 110
    %v285 = vpop.permute.xlu0 %284
    %286 = vrot.lane.b32.xlu0 %v276, 110
    %v287 = vpop.permute.xlu0 %286
    %288 = vrot.lane.b32.xlu0 %v277, 110
    %v289 = vpop.permute.xlu0 %288
    %vm290 = vcmask 900096
    %v291 = vsel %vm290, %v279, %v281
    %v292 = vsel %vm290, %v281, %v283
    %v293 = vsel %vm290, %v283, %v285
    %v294 = vsel %vm290, %v285, %v287
    %v295 = vsel %vm290, %v287, %v289
    %301 = vst [vmem:[#allocation2 + $0x28] sm:$0x80] %v291
    %302 = vst [vmem:[#allocation2 + $0x30] sm:$0x80] %v292
    %303 = vst [vmem:[#allocation2 + $0x38] sm:$0x80] %v293
    %304 = vst [vmem:[#allocation2 + $0x40] sm:$0x80] %v294
    %305 = vst [vmem:[#allocation2 + $0x48] sm:$0x80] %v295
    %306 = vst [vmem:[#allocation2 + $0x50] sm:$0x3] %v291
    %307 = vst [vmem:[#allocation2 + $0x58] sm:$0x3] %v292
    %308 = vst [vmem:[#allocation2 + $0x60] sm:$0x3] %v293
    %309 = vst [vmem:[#allocation2 + $0x68] sm:$0x3] %v294
    %310 = vst [vmem:[#allocation2 + $0x70] sm:$0x3] %v295
    %311 = vst [vmem:[#allocation1] ss:$2 sm:$0xff] %v55
    %s312 = scalar_lea.vmem [#allocation1], 16
    %313 = vst [vmem:[%s312] ss:$2 sm:$0xff] %v56
    %s314 = scalar_lea.vmem [#allocation1], 32
    %315 = vst [vmem:[%s314] ss:$2 sm:$0xff] %v57
    %v316 = vld.sshfl [vmem:[#allocation1] sm:$0xff pattern:$0x75316420]
    %v317 = vld.sshfl [vmem:[#allocation1 + $0x8] sm:$0xff pattern:$0x75316420]
    %v318 = vld.sshfl [vmem:[#allocation1 + $0x10] sm:$0xff pattern:$0x75316420]
    %v319 = vld.sshfl [vmem:[#allocation1 + $0x18] sm:$0xff pattern:$0x75316420]
    %v320 = vld.sshfl [vmem:[#allocation1 + $0x20] sm:$0xff pattern:$0x75316420]
    %v321 = vld.sshfl [vmem:[#allocation1 + $0x28] sm:$0xff pattern:$0x75316420]
    %v322 = vrot.slane %v316, 6
    %v323 = vrot.slane %v317, 6
    %v324 = vrot.slane %v318, 6
    %v325 = vrot.slane %v319, 6
    %v326 = vrot.slane %v320, 6
    %v327 = vrot.slane %v321, 6
    %328 = vrot.lane.b32.xlu0 %v322, 96
    %v329 = vpop.permute.xlu0 %328
    %330 = vrot.lane.b32.xlu0 %v323, 96
    %v331 = vpop.permute.xlu0 %330
    %332 = vrot.lane.b32.xlu0 %v324, 96
    %v333 = vpop.permute.xlu0 %332
    %334 = vrot.lane.b32.xlu0 %v325, 96
    %v335 = vpop.permute.xlu0 %334
    %336 = vrot.lane.b32.xlu0 %v326, 96
    %v337 = vpop.permute.xlu0 %336
    %338 = vrot.lane.b32.xlu0 %v327, 96
    %v339 = vpop.permute.xlu0 %338
    %vm340 = vcmask 785408
    %v341 = vsel %vm340, %v329, %v331
    %v342 = vsel %vm340, %v331, %v333
    %v343 = vsel %vm340, %v333, %v335
    %v344 = vsel %vm340, %v335, %v337
    %v345 = vsel %vm340, %v337, %v339
    %351 = vst [vmem:[#allocation2 + $0x50] sm:$0x1c] %v341
    %352 = vst [vmem:[#allocation2 + $0x58] sm:$0x1c] %v342
    %353 = vst [vmem:[#allocation2 + $0x60] sm:$0x1c] %v343
    %354 = vst [vmem:[#allocation2 + $0x68] sm:$0x1c] %v344
    %355 = vst [vmem:[#allocation2 + $0x70] sm:$0x1c] %v345
    %356 = vst [vmem:[#allocation1] ss:$2 sm:$0xff] %v55
    %s357 = scalar_lea.vmem [#allocation1], 16
    %358 = vst [vmem:[%s357] ss:$2 sm:$0xff] %v56
    %s359 = scalar_lea.vmem [#allocation1], 32
    %360 = vst [vmem:[%s359] ss:$2 sm:$0xff] %v57
    %v361 = vld.sshfl [vmem:[#allocation1] sm:$0xff pattern:$0x75316420]
    %v362 = vld.sshfl [vmem:[#allocation1 + $0x8] sm:$0xff pattern:$0x75316420]
    %v363 = vld.sshfl [vmem:[#allocation1 + $0x10] sm:$0xff pattern:$0x75316420]
    %v364 = vld.sshfl [vmem:[#allocation1 + $0x18] sm:$0xff pattern:$0x75316420]
    %v365 = vld.sshfl [vmem:[#allocation1 + $0x20] sm:$0xff pattern:$0x75316420]
    %v366 = vld.sshfl [vmem:[#allocation1 + $0x28] sm:$0xff pattern:$0x75316420]
    %v367 = vrot.slane %v361, 3
    %v368 = vrot.slane %v362, 3
    %v369 = vrot.slane %v363, 3
    %v370 = vrot.slane %v364, 3
    %v371 = vrot.slane %v365, 3
    %v372 = vrot.slane %v366, 3
    %373 = vrot.lane.b32.xlu0 %v367, 95
    %v374 = vpop.permute.xlu0 %373
    %375 = vrot.lane.b32.xlu0 %v368, 95
    %v376 = vpop.permute.xlu0 %375
    %377 = vrot.lane.b32.xlu0 %v369, 95
    %v378 = vpop.permute.xlu0 %377
    %379 = vrot.lane.b32.xlu0 %v370, 95
    %v380 = vpop.permute.xlu0 %379
    %381 = vrot.lane.b32.xlu0 %v371, 95
    %v382 = vpop.permute.xlu0 %381
    %383 = vrot.lane.b32.xlu0 %v372, 95
    %v384 = vpop.permute.xlu0 %383
    %vm385 = vcmask 777216
    %v386 = vsel %vm385, %v374, %v376
    %v387 = vsel %vm385, %v376, %v378
    %v388 = vsel %vm385, %v378, %v380
    %v389 = vsel %vm385, %v380, %v382
    %v390 = vsel %vm385, %v382, %v384
    %396 = vst [vmem:[#allocation2 + $0x50] sm:$0xe0] %v386
    %397 = vst [vmem:[#allocation2 + $0x58] sm:$0xe0] %v387
    %398 = vst [vmem:[#allocation2 + $0x60] sm:$0xe0] %v388
    %399 = vst [vmem:[#allocation2 + $0x68] sm:$0xe0] %v389
    %400 = vst [vmem:[#allocation2 + $0x70] sm:$0xe0] %v390
    %401 = vst [vmem:[#allocation1] ss:$2 sm:$0xff] %v55
    %s402 = scalar_lea.vmem [#allocation1], 16
    %403 = vst [vmem:[%s402] ss:$2 sm:$0xff] %v56
    %s404 = scalar_lea.vmem [#allocation1], 32
    %405 = vst [vmem:[%s404] ss:$2 sm:$0xff] %v57
    %v406 = vld.sshfl [vmem:[#allocation1] sm:$0xff pattern:$0x75316420]
    %v407 = vld.sshfl [vmem:[#allocation1 + $0x8] sm:$0xff pattern:$0x75316420]
    %v408 = vld.sshfl [vmem:[#allocation1 + $0x10] sm:$0xff pattern:$0x75316420]
    %v409 = vld.sshfl [vmem:[#allocation1 + $0x18] sm:$0xff pattern:$0x75316420]
    %v410 = vld.sshfl [vmem:[#allocation1 + $0x20] sm:$0xff pattern:$0x75316420]
    %v411 = vld.sshfl [vmem:[#allocation1 + $0x28] sm:$0xff pattern:$0x75316420]
    %412 = vrot.lane.b32.xlu0 %v406, 94
    %v413 = vpop.permute.xlu0 %412
    %414 = vrot.lane.b32.xlu0 %v407, 94
    %v415 = vpop.permute.xlu0 %414
    %416 = vrot.lane.b32.xlu0 %v408, 94
    %v417 = vpop.permute.xlu0 %416
    %418 = vrot.lane.b32.xlu0 %v409, 94
    %v419 = vpop.permute.xlu0 %418
    %420 = vrot.lane.b32.xlu0 %v410, 94
    %v421 = vpop.permute.xlu0 %420
    %422 = vrot.lane.b32.xlu0 %v411, 94
    %v423 = vpop.permute.xlu0 %422
    %vm424 = vcmask 769024
    %v425 = vsel %vm424, %v413, %v415
    %v426 = vsel %vm424, %v415, %v417
    %v427 = vsel %vm424, %v417, %v419
    %v428 = vsel %vm424, %v419, %v421
    %v429 = vsel %vm424, %v421, %v423
    %435 = vst [vmem:[#allocation2 + $0x78] sm:$0x7] %v425
    %436 = vst [vmem:[#allocation2 + $0x80] sm:$0x7] %v426
    %437 = vst [vmem:[#allocation2 + $0x88] sm:$0x7] %v427
    %438 = vst [vmem:[#allocation2 + $0x90] sm:$0x7] %v428
    %439 = vst [vmem:[#allocation2 + $0x98] sm:$0x7] %v429
    %v440 = vld [vmem:[#allocation2] sm:$0xff]
    %v441 = vld [vmem:[#allocation2 + $0x8] sm:$0xff]
    %v442 = vld [vmem:[#allocation2 + $0x10] sm:$0xff]
    %v443 = vld [vmem:[#allocation2 + $0x18] sm:$0xff]
    %v444 = vld [vmem:[#allocation2 + $0x20] sm:$0xff]
    %v445 = vld [vmem:[#allocation2 + $0x28] sm:$0xff]
    %v446 = vld [vmem:[#allocation2 + $0x30] sm:$0xff]
    %v447 = vld [vmem:[#allocation2 + $0x38] sm:$0xff]
    %v448 = vld [vmem:[#allocation2 + $0x40] sm:$0xff]
    %v449 = vld [vmem:[#allocation2 + $0x48] sm:$0xff]
    %v450 = vld [vmem:[#allocation2 + $0x50] sm:$0xff]
    %v451 = vld [vmem:[#allocation2 + $0x58] sm:$0xff]
    %v452 = vld [vmem:[#allocation2 + $0x60] sm:$0xff]
    %v453 = vld [vmem:[#allocation2 + $0x68] sm:$0xff]
    %v454 = vld [vmem:[#allocation2 + $0x70] sm:$0xff]
    %v455 = vld [vmem:[#allocation2 + $0x78] sm:$0xf]
    %v456 = vld [vmem:[#allocation2 + $0x80] sm:$0xf]
    %v457 = vld [vmem:[#allocation2 + $0x88] sm:$0xf]
    %v458 = vld [vmem:[#allocation2 + $0x90] sm:$0xf]
    %v459 = vld [vmem:[#allocation2 + $0x98] sm:$0xf]
    %vm460 = vcmask 228352
    %v462 = vsel %vm460, %v40, 0
    %vm464 = vcmask 1043456
    %v466 = vsel %vm464, %v455, 0
    %v469 = vsel %vm464, %v456, 0
    %v472 = vsel %vm464, %v457, 0
    %v475 = vsel %vm464, %v458, 0
    %v478 = vsel %vm464, %v459, 0
    %480 = vmatpush.msra.mxu0 0.0
    %481 = vmatpush.msra.mxu0 0.0
    %482 = vmatpush.msra.mxu0 0.0
    %483 = vmatpush.msra.mxu0 0.0
    %484 = vmatpush.msra.mxu0 0.0
    %485 = vmatpush.msra.mxu0 0.0
    %486 = vmatpush.msra.mxu0 0.0
    %487 = vmatpush.msra.mxu0 0.0
    %488 = vmatpush.msra.mxu0 0.0
    %489 = vmatpush.msra.mxu0 0.0
    %490 = vmatpush.msra.mxu0 0.0
    %491 = vmatpush.msra.mxu0 0.0
    %492 = vmatpush.msra.mxu0 %v466
    %493 = vmatpush.msra.mxu0 %v450
    %494 = vmatpush.msra.mxu0 %v445
    %495 = vmatpush.msra.mxu0 %v440
    %496 = vmatmul.f32.gmra.mxu0 %v462
    %v497 = vpop.f32.mrf.mxu0
    %v498 = vadd.f32 0.0, %v497
    %499 = vdwg.mxu0
    %500 = vmatpush.msra.mxu0 0.0
    %501 = vmatpush.msra.mxu0 0.0
    %502 = vmatpush.msra.mxu0 0.0
    %503 = vmatpush.msra.mxu0 0.0
    %504 = vmatpush.msra.mxu0 0.0
    %505 = vmatpush.msra.mxu0 0.0
    %506 = vmatpush.msra.mxu0 0.0
    %507 = vmatpush.msra.mxu0 0.0
    %508 = vmatpush.msra.mxu0 0.0
    %509 = vmatpush.msra.mxu0 0.0
    %510 = vmatpush.msra.mxu0 0.0
    %511 = vmatpush.msra.mxu0 0.0
    %512 = vmatpush.msra.mxu0 %v469
    %513 = vmatpush.msra.mxu0 %v451
    %514 = vmatpush.msra.mxu0 %v446
    %515 = vmatpush.msra.mxu0 %v441
    %516 = vmatmul.f32.gmra.mxu0 %v462
    %v517 = vpop.f32.mrf.mxu0
    %v518 = vadd.f32 0.0, %v517
    %519 = vdwg.mxu0
    %520 = vmatpush.msra.mxu0 0.0
    %521 = vmatpush.msra.mxu0 0.0
    %522 = vmatpush.msra.mxu0 0.0
    %523 = vmatpush.msra.mxu0 0.0
    %524 = vmatpush.msra.mxu0 0.0
    %525 = vmatpush.msra.mxu0 0.0
    %526 = vmatpush.msra.mxu0 0.0
    %527 = vmatpush.msra.mxu0 0.0
    %528 = vmatpush.msra.mxu0 0.0
    %529 = vmatpush.msra.mxu0 0.0
    %530 = vmatpush.msra.mxu0 0.0
    %531 = vmatpush.msra.mxu0 0.0
    %532 = vmatpush.msra.mxu0 %v472
    %533 = vmatpush.msra.mxu0 %v452
    %534 = vmatpush.msra.mxu0 %v447
    %535 = vmatpush.msra.mxu0 %v442
    %536 = vmatmul.f32.gmra.mxu0 %v462
    %v537 = vpop.f32.mrf.mxu0
    %v538 = vadd.f32 0.0, %v537
    %539 = vdwg.mxu0
    %540 = vmatpush.msra.mxu0 0.0
    %541 = vmatpush.msra.mxu0 0.0
    %542 = vmatpush.msra.mxu0 0.0
    %543 = vmatpush.msra.mxu0 0.0
    %544 = vmatpush.msra.mxu0 0.0
    %545 = vmatpush.msra.mxu0 0.0
    %546 = vmatpush.msra.mxu0 0.0
    %547 = vmatpush.msra.mxu0 0.0
    %548 = vmatpush.msra.mxu0 0.0
    %549 = vmatpush.msra.mxu0 0.0
    %550 = vmatpush.msra.mxu0 0.0
    %551 = vmatpush.msra.mxu0 0.0
    %552 = vmatpush.msra.mxu0 %v475
    %553 = vmatpush.msra.mxu0 %v453
    %554 = vmatpush.msra.mxu0 %v448
    %555 = vmatpush.msra.mxu0 %v443
    %556 = vmatmul.f32.gmra.mxu0 %v462
    %v557 = vpop.f32.mrf.mxu0
    %v558 = vadd.f32 0.0, %v557
    %559 = vdwg.mxu0
    %560 = vmatpush.msra.mxu0 0.0
    %561 = vmatpush.msra.mxu0 0.0
    %562 = vmatpush.msra.mxu0 0.0
    %563 = vmatpush.msra.mxu0 0.0
    %564 = vmatpush.msra.mxu0 0.0
    %565 = vmatpush.msra.mxu0 0.0
    %566 = vmatpush.msra.mxu0 0.0
    %567 = vmatpush.msra.mxu0 0.0
    %568 = vmatpush.msra.mxu0 0.0
    %569 = vmatpush.msra.mxu0 0.0
    %570 = vmatpush.msra.mxu0 0.0
    %571 = vmatpush.msra.mxu0 0.0
    %572 = vmatpush.msra.mxu0 %v478
    %573 = vmatpush.msra.mxu0 %v454
    %574 = vmatpush.msra.mxu0 %v449
    %575 = vmatpush.msra.mxu0 %v444
    %576 = vmatmul.f32.gmra.mxu0 %v462
    %v577 = vpop.f32.mrf.mxu0
    %v578 = vadd.f32 0.0, %v577
    %579 = vdwg.mxu0
    %580 = vst [vmem:[#allocation2] sm:$0x7] %v498
    %581 = vst [vmem:[#allocation2 + $0x8] sm:$0x7] %v518
    %582 = vst [vmem:[#allocation2 + $0x10] sm:$0x7] %v538
    %583 = vst [vmem:[#allocation2 + $0x18] sm:$0x7] %v558
    %v589 = vrot.slane %v498, 5
    %v590 = vrot.slane %v518, 5
    %v591 = vrot.slane %v538, 5
    %v592 = vrot.slane %v558, 5
    %v593 = vrot.slane %v578, 5
    %594 = vrot.lane.b32.xlu0 %v589, 127
    %v595 = vpop.permute.xlu0 %594
    %596 = vrot.lane.b32.xlu0 %v590, 127
    %v597 = vpop.permute.xlu0 %596
    %598 = vrot.lane.b32.xlu0 %v591, 127
    %v599 = vpop.permute.xlu0 %598
    %600 = vrot.lane.b32.xlu0 %v592, 127
    %v601 = vpop.permute.xlu0 %600
    %602 = vrot.lane.b32.xlu0 %v593, 127
    %v603 = vpop.permute.xlu0 %602
    %v604 = vsel %vm110, %v595, %v597
    %v605 = vsel %vm110, %v597, %v599
    %v606 = vsel %vm110, %v599, %v601
    %v607 = vsel %vm110, %v601, %v603
    %612 = vst [vmem:[#allocation2] sm:$0x38] %v604
    %613 = vst [vmem:[#allocation2 + $0x8] sm:$0x38] %v605
    %614 = vst [vmem:[#allocation2 + $0x10] sm:$0x38] %v606
    %615 = vst [vmem:[#allocation2 + $0x18] sm:$0x38] %v607
    %v616 = vrot.slane %v498, 2
    %v617 = vrot.slane %v518, 2
    %v618 = vrot.slane %v538, 2
    %v619 = vrot.slane %v558, 2
    %v620 = vrot.slane %v578, 2
    %621 = vrot.lane.b32.xlu0 %v616, 126
    %v622 = vpop.permute.xlu0 %621
    %623 = vrot.lane.b32.xlu0 %v617, 126
    %v624 = vpop.permute.xlu0 %623
    %625 = vrot.lane.b32.xlu0 %v618, 126
    %v626 = vpop.permute.xlu0 %625
    %627 = vrot.lane.b32.xlu0 %v619, 126
    %v628 = vpop.permute.xlu0 %627
    %629 = vrot.lane.b32.xlu0 %v620, 126
    %v630 = vpop.permute.xlu0 %629
    %v631 = vsel %vm155, %v622, %v624
    %v632 = vsel %vm155, %v624, %v626
    %v633 = vsel %vm155, %v626, %v628
    %v634 = vsel %vm155, %v628, %v630
    %639 = vst [vmem:[#allocation2] sm:$0xc0] %v631
    %640 = vst [vmem:[#allocation2 + $0x8] sm:$0xc0] %v632
    %641 = vst [vmem:[#allocation2 + $0x10] sm:$0xc0] %v633
    %642 = vst [vmem:[#allocation2 + $0x18] sm:$0xc0] %v634
    %643 = vst [vmem:[#allocation2 + $0x28] sm:$0x1] %v631
    %644 = vst [vmem:[#allocation2 + $0x30] sm:$0x1] %v632
    %645 = vst [vmem:[#allocation2 + $0x38] sm:$0x1] %v633
    %646 = vst [vmem:[#allocation2 + $0x40] sm:$0x1] %v634
    %v647 = vrot.slane %v498, 7
    %v648 = vrot.slane %v518, 7
    %v649 = vrot.slane %v538, 7
    %v650 = vrot.slane %v558, 7
    %v651 = vrot.slane %v578, 7
    %652 = vrot.lane.b32.xlu0 %v647, 112
    %v653 = vpop.permute.xlu0 %652
    %654 = vrot.lane.b32.xlu0 %v648, 112
    %v655 = vpop.permute.xlu0 %654
    %656 = vrot.lane.b32.xlu0 %v649, 112
    %v657 = vpop.permute.xlu0 %656
    %658 = vrot.lane.b32.xlu0 %v650, 112
    %v659 = vpop.permute.xlu0 %658
    %660 = vrot.lane.b32.xlu0 %v651, 112
    %v661 = vpop.permute.xlu0 %660
    %v662 = vsel %vm205, %v653, %v655
    %v663 = vsel %vm205, %v655, %v657
    %v664 = vsel %vm205, %v657, %v659
    %v665 = vsel %vm205, %v659, %v661
    %670 = vst [vmem:[#allocation2 + $0x28] sm:$0xe] %v662
    %671 = vst [vmem:[#allocation2 + $0x30] sm:$0xe] %v663
    %672 = vst [vmem:[#allocation2 + $0x38] sm:$0xe] %v664
    %673 = vst [vmem:[#allocation2 + $0x40] sm:$0xe] %v665
    %v674 = vrot.slane %v498, 4
    %v675 = vrot.slane %v518, 4
    %v676 = vrot.slane %v538, 4
    %v677 = vrot.slane %v558, 4
    %v678 = vrot.slane %v578, 4
    %679 = vrot.lane.b32.xlu0 %v674, 111
    %v680 = vpop.permute.xlu0 %679
    %681 = vrot.lane.b32.xlu0 %v675, 111
    %v682 = vpop.permute.xlu0 %681
    %683 = vrot.lane.b32.xlu0 %v676, 111
    %v684 = vpop.permute.xlu0 %683
    %685 = vrot.lane.b32.xlu0 %v677, 111
    %v686 = vpop.permute.xlu0 %685
    %687 = vrot.lane.b32.xlu0 %v678, 111
    %v688 = vpop.permute.xlu0 %687
    %v689 = vsel %vm245, %v680, %v682
    %v690 = vsel %vm245, %v682, %v684
    %v691 = vsel %vm245, %v684, %v686
    %v692 = vsel %vm245, %v686, %v688
    %697 = vst [vmem:[#allocation2 + $0x28] sm:$0x70] %v689
    %698 = vst [vmem:[#allocation2 + $0x30] sm:$0x70] %v690
    %699 = vst [vmem:[#allocation2 + $0x38] sm:$0x70] %v691
    %700 = vst [vmem:[#allocation2 + $0x40] sm:$0x70] %v692
    %v701 = vrot.slane %v498, 1
    %v702 = vrot.slane %v518, 1
    %v703 = vrot.slane %v538, 1
    %v704 = vrot.slane %v558, 1
    %v705 = vrot.slane %v578, 1
    %706 = vrot.lane.b32.xlu0 %v701, 110
    %v707 = vpop.permute.xlu0 %706
    %708 = vrot.lane.b32.xlu0 %v702, 110
    %v709 = vpop.permute.xlu0 %708
    %710 = vrot.lane.b32.xlu0 %v703, 110
    %v711 = vpop.permute.xlu0 %710
    %712 = vrot.lane.b32.xlu0 %v704, 110
    %v713 = vpop.permute.xlu0 %712
    %714 = vrot.lane.b32.xlu0 %v705, 110
    %v715 = vpop.permute.xlu0 %714
    %v716 = vsel %vm290, %v707, %v709
    %v717 = vsel %vm290, %v709, %v711
    %v718 = vsel %vm290, %v711, %v713
    %v719 = vsel %vm290, %v713, %v715
    %724 = vst [vmem:[#allocation2 + $0x28] sm:$0x80] %v716
    %725 = vst [vmem:[#allocation2 + $0x30] sm:$0x80] %v717
    %726 = vst [vmem:[#allocation2 + $0x38] sm:$0x80] %v718
    %727 = vst [vmem:[#allocation2 + $0x40] sm:$0x80] %v719
    %728 = vst [vmem:[#allocation2 + $0x50] sm:$0x3] %v716
    %729 = vst [vmem:[#allocation2 + $0x58] sm:$0x3] %v717
    %730 = vst [vmem:[#allocation2 + $0x60] sm:$0x3] %v718
    %731 = vst [vmem:[#allocation2 + $0x68] sm:$0x3] %v719
    %v732 = vrot.slane %v498, 6
    %v733 = vrot.slane %v518, 6
    %v734 = vrot.slane %v538, 6
    %v735 = vrot.slane %v558, 6
    %v736 = vrot.slane %v578, 6
    %737 = vrot.lane.b32.xlu0 %v732, 96
    %v738 = vpop.permute.xlu0 %737
    %739 = vrot.lane.b32.xlu0 %v733, 96
    %v740 = vpop.permute.xlu0 %739
    %741 = vrot.lane.b32.xlu0 %v734, 96
    %v742 = vpop.permute.xlu0 %741
    %743 = vrot.lane.b32.xlu0 %v735, 96
    %v744 = vpop.permute.xlu0 %743
    %745 = vrot.lane.b32.xlu0 %v736, 96
    %v746 = vpop.permute.xlu0 %745
    %v747 = vsel %vm340, %v738, %v740
    %v748 = vsel %vm340, %v740, %v742
    %v749 = vsel %vm340, %v742, %v744
    %v750 = vsel %vm340, %v744, %v746
    %755 = vst [vmem:[#allocation2 + $0x50] sm:$0x1c] %v747
    %756 = vst [vmem:[#allocation2 + $0x58] sm:$0x1c] %v748
    %757 = vst [vmem:[#allocation2 + $0x60] sm:$0x1c] %v749
    %758 = vst [vmem:[#allocation2 + $0x68] sm:$0x1c] %v750
    %v759 = vrot.slane %v498, 3
    %v760 = vrot.slane %v518, 3
    %v761 = vrot.slane %v538, 3
    %v762 = vrot.slane %v558, 3
    %v763 = vrot.slane %v578, 3
    %764 = vrot.lane.b32.xlu0 %v759, 95
    %v765 = vpop.permute.xlu0 %764
    %766 = vrot.lane.b32.xlu0 %v760, 95
    %v767 = vpop.permute.xlu0 %766
    %768 = vrot.lane.b32.xlu0 %v761, 95
    %v769 = vpop.permute.xlu0 %768
    %770 = vrot.lane.b32.xlu0 %v762, 95
    %v771 = vpop.permute.xlu0 %770
    %772 = vrot.lane.b32.xlu0 %v763, 95
    %v773 = vpop.permute.xlu0 %772
    %v774 = vsel %vm385, %v765, %v767
    %v775 = vsel %vm385, %v767, %v769
    %v776 = vsel %vm385, %v769, %v771
    %v777 = vsel %vm385, %v771, %v773
    %782 = vst [vmem:[#allocation2 + $0x50] sm:$0xe0] %v774
    %783 = vst [vmem:[#allocation2 + $0x58] sm:$0xe0] %v775
    %784 = vst [vmem:[#allocation2 + $0x60] sm:$0xe0] %v776
    %785 = vst [vmem:[#allocation2 + $0x68] sm:$0xe0] %v777
    %786 = vrot.lane.b32.xlu0 %v498, 94
    %v787 = vpop.permute.xlu0 %786
    %788 = vrot.lane.b32.xlu0 %v518, 94
    %v789 = vpop.permute.xlu0 %788
    %790 = vrot.lane.b32.xlu0 %v538, 94
    %v791 = vpop.permute.xlu0 %790
    %792 = vrot.lane.b32.xlu0 %v558, 94
    %v793 = vpop.permute.xlu0 %792
    %794 = vrot.lane.b32.xlu0 %v578, 94
    %v795 = vpop.permute.xlu0 %794
    %v796 = vsel %vm424, %v787, %v789
    %v797 = vsel %vm424, %v789, %v791
    %v798 = vsel %vm424, %v791, %v793
    %v799 = vsel %vm424, %v793, %v795
    %804 = vst [vmem:[#allocation2 + $0x78] sm:$0x7] %v796
    %805 = vst [vmem:[#allocation2 + $0x80] sm:$0x7] %v797
    %806 = vst [vmem:[#allocation2 + $0x88] sm:$0x7] %v798
    %807 = vst [vmem:[#allocation2 + $0x90] sm:$0x7] %v799
    %v808 = vld [vmem:[#allocation2] sm:$0xff]
    %v809 = vld [vmem:[#allocation2 + $0x8] sm:$0xff]
    %v810 = vld [vmem:[#allocation2 + $0x10] sm:$0xff]
    %v811 = vld [vmem:[#allocation2 + $0x18] sm:$0xff]
    %v812 = vld [vmem:[#allocation2 + $0x28] sm:$0xff]
    %v813 = vld [vmem:[#allocation2 + $0x30] sm:$0xff]
    %v814 = vld [vmem:[#allocation2 + $0x38] sm:$0xff]
    %v815 = vld [vmem:[#allocation2 + $0x40] sm:$0xff]
    %v816 = vld [vmem:[#allocation2 + $0x50] sm:$0xff]
    %v817 = vld [vmem:[#allocation2 + $0x58] sm:$0xff]
    %v818 = vld [vmem:[#allocation2 + $0x60] sm:$0xff]
    %v819 = vld [vmem:[#allocation2 + $0x68] sm:$0xff]
    %v820 = vld [vmem:[#allocation2 + $0x78] sm:$0xf]
    %v821 = vld [vmem:[#allocation2 + $0x80] sm:$0xf]
    %v822 = vld [vmem:[#allocation2 + $0x88] sm:$0xf]
    %v823 = vld [vmem:[#allocation2 + $0x90] sm:$0xf]
    %v825 = vsel %vm464, %v820, 0
    %v828 = vsel %vm464, %v821, 0
    %v831 = vsel %vm464, %v822, 0
    %v834 = vsel %vm464, %v823, 0
    %836 = vmatpush.msra.mxu0 0.0
    %837 = vmatpush.msra.mxu0 0.0
    %838 = vmatpush.msra.mxu0 0.0
    %839 = vmatpush.msra.mxu0 0.0
    %840 = vmatpush.msra.mxu0 0.0
    %841 = vmatpush.msra.mxu0 0.0
    %842 = vmatpush.msra.mxu0 0.0
    %843 = vmatpush.msra.mxu0 0.0
    %844 = vmatpush.msra.mxu0 0.0
    %845 = vmatpush.msra.mxu0 0.0
    %846 = vmatpush.msra.mxu0 0.0
    %847 = vmatpush.msra.mxu0 0.0
    %848 = vmatpush.msra.mxu0 %v825
    %849 = vmatpush.msra.mxu0 %v816
    %850 = vmatpush.msra.mxu0 %v812
    %851 = vmatpush.msra.mxu0 %v808
    %852 = vmatmul.f32.gmra.mxu0 %v462
    %v853 = vpop.f32.mrf.mxu0
    %v854 = vadd.f32 0.0, %v853
    %855 = vdwg.mxu0
    %856 = vmatpush.msra.mxu0 0.0
    %857 = vmatpush.msra.mxu0 0.0
    %858 = vmatpush.msra.mxu0 0.0
    %859 = vmatpush.msra.mxu0 0.0
    %860 = vmatpush.msra.mxu0 0.0
    %861 = vmatpush.msra.mxu0 0.0
    %862 = vmatpush.msra.mxu0 0.0
    %863 = vmatpush.msra.mxu0 0.0
    %864 = vmatpush.msra.mxu0 0.0
    %865 = vmatpush.msra.mxu0 0.0
    %866 = vmatpush.msra.mxu0 0.0
    %867 = vmatpush.msra.mxu0 0.0
    %868 = vmatpush.msra.mxu0 %v828
    %869 = vmatpush.msra.mxu0 %v817
    %870 = vmatpush.msra.mxu0 %v813
    %871 = vmatpush.msra.mxu0 %v809
    %872 = vmatmul.f32.gmra.mxu0 %v462
    %v873 = vpop.f32.mrf.mxu0
    %v874 = vadd.f32 0.0, %v873
    %875 = vdwg.mxu0
    %876 = vmatpush.msra.mxu0 0.0
    %877 = vmatpush.msra.mxu0 0.0
    %878 = vmatpush.msra.mxu0 0.0
    %879 = vmatpush.msra.mxu0 0.0
    %880 = vmatpush.msra.mxu0 0.0
    %881 = vmatpush.msra.mxu0 0.0
    %882 = vmatpush.msra.mxu0 0.0
    %883 = vmatpush.msra.mxu0 0.0
    %884 = vmatpush.msra.mxu0 0.0
    %885 = vmatpush.msra.mxu0 0.0
    %886 = vmatpush.msra.mxu0 0.0
    %887 = vmatpush.msra.mxu0 0.0
    %888 = vmatpush.msra.mxu0 %v831
    %889 = vmatpush.msra.mxu0 %v818
    %890 = vmatpush.msra.mxu0 %v814
    %891 = vmatpush.msra.mxu0 %v810
    %892 = vmatmul.f32.gmra.mxu0 %v462
    %v893 = vpop.f32.mrf.mxu0
    %v894 = vadd.f32 0.0, %v893
    %895 = vdwg.mxu0
    %896 = vmatpush.msra.mxu0 0.0
    %897 = vmatpush.msra.mxu0 0.0
    %898 = vmatpush.msra.mxu0 0.0
    %899 = vmatpush.msra.mxu0 0.0
    %900 = vmatpush.msra.mxu0 0.0
    %901 = vmatpush.msra.mxu0 0.0
    %902 = vmatpush.msra.mxu0 0.0
    %903 = vmatpush.msra.mxu0 0.0
    %904 = vmatpush.msra.mxu0 0.0
    %905 = vmatpush.msra.mxu0 0.0
    %906 = vmatpush.msra.mxu0 0.0
    %907 = vmatpush.msra.mxu0 0.0
    %908 = vmatpush.msra.mxu0 %v834
    %909 = vmatpush.msra.mxu0 %v819
    %910 = vmatpush.msra.mxu0 %v815
    %911 = vmatpush.msra.mxu0 %v811
    %912 = vmatmul.f32.gmra.mxu0 %v462
    %v913 = vpop.f32.mrf.mxu0
    %v914 = vadd.f32 0.0, %v913
    %915 = vdwg.mxu0
    %v917 = vperm.slane %v45, 0
    %v918 = vperm.slane %v45, 1
    %v919 = vperm.slane %v45, 2
    %v920 = vperm.slane %v45, 3
    %v921 = vperm.slane %v45, 4
    %v927 = vmul.f32 %v498, %v917
    %v928 = vmul.f32 %v518, %v918
    %v929 = vmul.f32 %v538, %v919
    %v930 = vmul.f32 %v558, %v920
    %v931 = vmul.f32 %v578, %v921
    %vm932 = vcmask 1042432
    %v933 = vsel %vm932, %v927, 0.0
    %v934 = vsel %vm932, %v928, 0.0
    %v935 = vadd.f32 %v933, %v934
    %v936 = vsel %vm932, %v929, 0.0
    %v937 = vadd.f32 %v935, %v936
    %v938 = vsel %vm932, %v930, 0.0
    %v939 = vadd.f32 %v937, %v938
    %v940 = vsel %vm932, %v931, 0.0
    %v941 = vadd.f32 %v939, %v940
    %942 = vadd.xlane.f32.xlu0 %v941
    %v943 = vpop.xlane.xlu0 %942
    %v944 = vmul.f32 %v943, 0.0025510204
    %v945 = vmul.f32 %v927, %v498
    %v946 = vmul.f32 %v928, %v518
    %v947 = vmul.f32 %v929, %v538
    %v948 = vmul.f32 %v930, %v558
    %v949 = vmul.f32 %v931, %v578
    %v950 = vsel %vm932, %v945, 0.0
    %v951 = vsel %vm932, %v946, 0.0
    %v952 = vadd.f32 %v950, %v951
    %v953 = vsel %vm932, %v947, 0.0
    %v954 = vadd.f32 %v952, %v953
    %v955 = vsel %vm932, %v948, 0.0
    %v956 = vadd.f32 %v954, %v955
    %v957 = vsel %vm932, %v949, 0.0
    %v958 = vadd.f32 %v956, %v957
    %959 = vadd.xlane.f32.xlu0 %v958
    %v960 = vpop.xlane.xlu0 %959
    %v961 = vmul.f32 %v960, 0.0025510204
    %v962 = vmul.f32 %v944, %v944
    %v963 = vsub.f32 %v961, %v962
    %v964 = vadd.f32 %v963, 1e-05
    %v965 = vrsqrt.pop %v964
    %v966 = vmul.f32 %v965, %v964
    %v967 = vmul.f32 %v966, %v965
    %v968 = vmul.f32 0.5, %v967
    %v969 = vsub.f32 1.5, %v968
    %v970 = vmul.f32 %v965, %v969
    %vm971 = vweird.f32 %v964
    %vm972 = vweird.f32 %v965
    %vm973 = vmor %vm971, %vm972
    %v974 = vsel %vm973, %v965, %v970
    %v975 = vmul.f32 %v40, %v974
    %v976 = vmul.f32 %v975, %v944
    %978 = vrot.lane.b32.xlu0 %v976, 1
    %v979 = vpop.permute.xlu0 %978
    %v981 = vsub.f32 %v40, %v979
    %v983 = vperm.slane %v47, 0
    %v984 = vperm.slane %v47, 1
    %v985 = vperm.slane %v47, 2
    %v986 = vperm.slane %v47, 3
    %v991 = vmul.f32 %v854, %v983
    %v992 = vmul.f32 %v874, %v984
    %v993 = vmul.f32 %v894, %v985
    %v994 = vmul.f32 %v914, %v986
    %v995 = vsel %vm932, %v991, 0.0
    %v996 = vsel %vm932, %v992, 0.0
    %v997 = vadd.f32 %v995, %v996
    %v998 = vsel %vm932, %v993, 0.0
    %v999 = vadd.f32 %v997, %v998
    %v1000 = vsel %vm932, %v994, 0.0
    %v1001 = vadd.f32 %v999, %v1000
    %1002 = vadd.xlane.f32.xlu0 %v1001
    %v1003 = vpop.xlane.xlu0 %1002
    %v1004 = vmul.f32 %v1003, 0.0034722222
    %v1005 = vmul.f32 %v991, %v854
    %v1006 = vmul.f32 %v992, %v874
    %v1007 = vmul.f32 %v993, %v894
    %v1008 = vmul.f32 %v994, %v914
    %v1009 = vsel %vm932, %v1005, 0.0
    %v1010 = vsel %vm932, %v1006, 0.0
    %v1011 = vadd.f32 %v1009, %v1010
    %v1012 = vsel %vm932, %v1007, 0.0
    %v1013 = vadd.f32 %v1011, %v1012
    %v1014 = vsel %vm932, %v1008, 0.0
    %v1015 = vadd.f32 %v1013, %v1014
    %1016 = vadd.xlane.f32.xlu0 %v1015
    %v1017 = vpop.xlane.xlu0 %1016
    %v1018 = vmul.f32 %v1017, 0.0034722222
    %v1019 = vmul.f32 %v1004, %v1004
    %v1020 = vsub.f32 %v1018, %v1019
    %v1021 = vadd.f32 %v1020, 1e-05
    %v1022 = vrsqrt.pop %v1021
    %v1023 = vmul.f32 %v1022, %v1021
    %v1024 = vmul.f32 %v1023, %v1022
    %v1025 = vmul.f32 0.5, %v1024
    %v1026 = vsub.f32 1.5, %v1025
    %v1027 = vmul.f32 %v1022, %v1026
    %vm1028 = vweird.f32 %v1021
    %vm1029 = vweird.f32 %v1022
    %vm1030 = vmor %vm1028, %vm1029
    %v1031 = vsel %vm1030, %v1022, %v1027
    %v1032 = vmul.f32 %v40, %v1031
    %v1033 = vmul.f32 %v1032, %v1004
    %1035 = vrot.lane.b32.xlu0 %v1033, 1
    %v1036 = vpop.permute.xlu0 %1035
    %v1038 = vsub.f32 %v40, %v1036
    %1040 = vset.pattern.permute.xlu0 28
    %1041 = vperm.xlu0 %1040, %v975
    %v1042 = vpop.permute.xlu0 %1041
    %v1044 = vmul.f32 %v1042, %v40
    %1046 = vrot.lane.b32.xlu0 %v1044, 96
    %v1047 = vpop.permute.xlu0 %1046
    %vm1048 = vcmask 23552
    %v1050 = vsel %vm1048, %v41, 0
    %v1052 = vsel %vm932, %v1047, 0
    %1054 = vmatpush.msra.mxu0 0.0
    %1055 = vmatpush.msra.mxu0 0.0
    %1056 = vmatpush.msra.mxu0 0.0
    %1057 = vmatpush.msra.mxu0 0.0
    %1058 = vmatpush.msra.mxu0 0.0
    %1059 = vmatpush.msra.mxu0 0.0
    %1060 = vmatpush.msra.mxu0 0.0
    %1061 = vmatpush.msra.mxu0 0.0
    %1062 = vmatpush.msra.mxu0 0.0
    %1063 = vmatpush.msra.mxu0 0.0
    %1064 = vmatpush.msra.mxu0 0.0
    %1065 = vmatpush.msra.mxu0 0.0
    %1066 = vmatpush.msra.mxu0 0.0
    %1067 = vmatpush.msra.mxu0 0.0
    %1068 = vmatpush.msra.mxu0 0.0
    %1069 = vmatpush.msra.mxu0 %v1052
    %1070 = vmatmul.f32.gmra.mxu0 %v1050
    %v1071 = vpop.f32.mrf.mxu0
    %v1072 = vadd.f32 0.0, %v1071
    %1073 = vdwg.mxu0
    %1075 = vset.pattern.permute.xlu0 30
    %1076 = vperm.xlu0 %1075, %v1032
    %v1077 = vpop.permute.xlu0 %1076
    %v1079 = vmul.f32 %v1077, %v40
    %1081 = vrot.lane.b32.xlu0 %v1079, 96
    %v1082 = vpop.permute.xlu0 %1081
    %v1083 = vsel %vm932, %v1082, 0
    %1085 = vmatpush.msra.mxu0 0.0
    %1086 = vmatpush.msra.mxu0 0.0
    %1087 = vmatpush.msra.mxu0 0.0
    %1088 = vmatpush.msra.mxu0 0.0
    %1089 = vmatpush.msra.mxu0 0.0
    %1090 = vmatpush.msra.mxu0 0.0
    %1091 = vmatpush.msra.mxu0 0.0
    %1092 = vmatpush.msra.mxu0 0.0
    %1093 = vmatpush.msra.mxu0 0.0
    %1094 = vmatpush.msra.mxu0 0.0
    %1095 = vmatpush.msra.mxu0 0.0
    %1096 = vmatpush.msra.mxu0 0.0
    %1097 = vmatpush.msra.mxu0 0.0
    %1098 = vmatpush.msra.mxu0 0.0
    %1099 = vmatpush.msra.mxu0 0.0
    %1100 = vmatpush.msra.mxu0 %v1083
    %1101 = vmatmul.f32.gmra.mxu0 %v1050
    %v1102 = vpop.f32.mrf.mxu0
    %v1103 = vadd.f32 0.0, %v1102
    %1104 = vdwg.mxu0
    %1106 = vrot.lane.b32.xlu0 %v981, 99
    %v1107 = vpop.permute.xlu0 %1106
    %v1108 = vsel %vm932, %v1107, 0
    %1110 = vmatpush.msra.mxu0 0.0
    %1111 = vmatpush.msra.mxu0 0.0
    %1112 = vmatpush.msra.mxu0 0.0
    %1113 = vmatpush.msra.mxu0 0.0
    %1114 = vmatpush.msra.mxu0 0.0
    %1115 = vmatpush.msra.mxu0 0.0
    %1116 = vmatpush.msra.mxu0 0.0
    %1117 = vmatpush.msra.mxu0 0.0
    %1118 = vmatpush.msra.mxu0 0.0
    %1119 = vmatpush.msra.mxu0 0.0
    %1120 = vmatpush.msra.mxu0 0.0
    %1121 = vmatpush.msra.mxu0 0.0
    %1122 = vmatpush.msra.mxu0 0.0
    %1123 = vmatpush.msra.mxu0 0.0
    %1124 = vmatpush.msra.mxu0 0.0
    %1125 = vmatpush.msra.mxu0 %v1108
    %1126 = vmatmul.f32.gmra.mxu0 %v1050
    %v1127 = vpop.f32.mrf.mxu0
    %v1128 = vadd.f32 0.0, %v1127
    %1129 = vdwg.mxu0
    %1131 = vrot.lane.b32.xlu0 %v1128, 3
    %v1132 = vpop.permute.xlu0 %1131
    %v1134 = vadd.f32 %v41, %v1132
    %1136 = vrot.lane.b32.xlu0 %v1038, 97
    %v1137 = vpop.permute.xlu0 %1136
    %v1138 = vsel %vm932, %v1137, 0
    %1140 = vmatpush.msra.mxu0 0.0
    %1141 = vmatpush.msra.mxu0 0.0
    %1142 = vmatpush.msra.mxu0 0.0
    %1143 = vmatpush.msra.mxu0 0.0
    %1144 = vmatpush.msra.mxu0 0.0
    %1145 = vmatpush.msra.mxu0 0.0
    %1146 = vmatpush.msra.mxu0 0.0
    %1147 = vmatpush.msra.mxu0 0.0
    %1148 = vmatpush.msra.mxu0 0.0
    %1149 = vmatpush.msra.mxu0 0.0
    %1150 = vmatpush.msra.mxu0 0.0
    %1151 = vmatpush.msra.mxu0 0.0
    %1152 = vmatpush.msra.mxu0 0.0
    %1153 = vmatpush.msra.mxu0 0.0
    %1154 = vmatpush.msra.mxu0 0.0
    %1155 = vmatpush.msra.mxu0 %v1138
    %1156 = vmatmul.f32.gmra.mxu0 %v1050
    %v1157 = vpop.f32.mrf.mxu0
    %v1158 = vadd.f32 0.0, %v1157
    %1159 = vdwg.mxu0
    %1161 = vrot.lane.b32.xlu0 %v1158, 3
    %v1162 = vpop.permute.xlu0 %1161
    %v1164 = vadd.f32 %v41, %v1162
    %1166 = vset.pattern.permute.xlu0 3
    %1167 = vperm.xlu0 %1166, %v1134
    %v1168 = vpop.permute.xlu0 %1167
    %v1171 = vsel %vm1048, %v1072, 0
    %v1173 = vsel %vm932, %v498, 0
    %v1175 = vsel %vm932, %v518, 0
    %v1177 = vsel %vm932, %v538, 0
    %v1179 = vsel %vm932, %v558, 0
    %1181 = vmatpush.msra.mxu0 0.0
    %1182 = vmatpush.msra.mxu0 0.0
    %1183 = vmatpush.msra.mxu0 0.0
    %1184 = vmatpush.msra.mxu0 0.0
    %1185 = vmatpush.msra.mxu0 0.0
    %1186 = vmatpush.msra.mxu0 0.0
    %1187 = vmatpush.msra.mxu0 0.0
    %1188 = vmatpush.msra.mxu0 0.0
    %1189 = vmatpush.msra.mxu0 0.0
    %1190 = vmatpush.msra.mxu0 0.0
    %1191 = vmatpush.msra.mxu0 0.0
    %1192 = vmatpush.msra.mxu0 0.0
    %1193 = vmatpush.msra.mxu0 0.0
    %1194 = vmatpush.msra.mxu0 0.0
    %1195 = vmatpush.msra.mxu0 0.0
    %1196 = vmatpush.msra.mxu0 %v1173
    %1197 = vmatmul.f32.gmra.mxu0 %v1171
    %v1198 = vpop.f32.mrf.mxu0
    %v1199 = vadd.f32 %v1168, %v1198
    %1200 = vdwg.mxu0
    %1201 = vmatpush.msra.mxu0 0.0
    %1202 = vmatpush.msra.mxu0 0.0
    %1203 = vmatpush.msra.mxu0 0.0
    %1204 = vmatpush.msra.mxu0 0.0
    %1205 = vmatpush.msra.mxu0 0.0
    %1206 = vmatpush.msra.mxu0 0.0
    %1207 = vmatpush.msra.mxu0 0.0
    %1208 = vmatpush.msra.mxu0 0.0
    %1209 = vmatpush.msra.mxu0 0.0
    %1210 = vmatpush.msra.mxu0 0.0
    %1211 = vmatpush.msra.mxu0 0.0
    %1212 = vmatpush.msra.mxu0 0.0
    %1213 = vmatpush.msra.mxu0 0.0
    %1214 = vmatpush.msra.mxu0 0.0
    %1215 = vmatpush.msra.mxu0 0.0
    %1216 = vmatpush.msra.mxu0 %v1175
    %1217 = vmatmul.f32.gmra.mxu0 %v1171
    %v1218 = vpop.f32.mrf.mxu0
    %v1219 = vadd.f32 %v1168, %v1218
    %1220 = vdwg.mxu0
    %1221 = vmatpush.msra.mxu0 0.0
    %1222 = vmatpush.msra.mxu0 0.0
    %1223 = vmatpush.msra.mxu0 0.0
    %1224 = vmatpush.msra.mxu0 0.0
    %1225 = vmatpush.msra.mxu0 0.0
    %1226 = vmatpush.msra.mxu0 0.0
    %1227 = vmatpush.msra.mxu0 0.0
    %1228 = vmatpush.msra.mxu0 0.0
    %1229 = vmatpush.msra.mxu0 0.0
    %1230 = vmatpush.msra.mxu0 0.0
    %1231 = vmatpush.msra.mxu0 0.0
    %1232 = vmatpush.msra.mxu0 0.0
    %1233 = vmatpush.msra.mxu0 0.0
    %1234 = vmatpush.msra.mxu0 0.0
    %1235 = vmatpush.msra.mxu0 0.0
    %1236 = vmatpush.msra.mxu0 %v1177
    %1237 = vmatmul.f32.gmra.mxu0 %v1171
    %v1238 = vpop.f32.mrf.mxu0
    %v1239 = vadd.f32 %v1168, %v1238
    %1240 = vdwg.mxu0
    %1241 = vmatpush.msra.mxu0 0.0
    %1242 = vmatpush.msra.mxu0 0.0
    %1243 = vmatpush.msra.mxu0 0.0
    %1244 = vmatpush.msra.mxu0 0.0
    %1245 = vmatpush.msra.mxu0 0.0
    %1246 = vmatpush.msra.mxu0 0.0
    %1247 = vmatpush.msra.mxu0 0.0
    %1248 = vmatpush.msra.mxu0 0.0
    %1249 = vmatpush.msra.mxu0 0.0
    %1250 = vmatpush.msra.mxu0 0.0
    %1251 = vmatpush.msra.mxu0 0.0
    %1252 = vmatpush.msra.mxu0 0.0
    %1253 = vmatpush.msra.mxu0 0.0
    %1254 = vmatpush.msra.mxu0 0.0
    %1255 = vmatpush.msra.mxu0 0.0
    %1256 = vmatpush.msra.mxu0 %v1179
    %1257 = vmatmul.f32.gmra.mxu0 %v1171
    %v1258 = vpop.f32.mrf.mxu0
    %v1259 = vadd.f32 %v1168, %v1258
    %1260 = vdwg.mxu0
    %v1265 = vrot.slane %v1219, 7
    %v1266 = vrot.slane %v1239, 6
    %v1267 = vrot.slane %v1259, 5
    %vm1268 = vcmask 1040384
    %v1269 = vsel %vm1268, %v1199, %v1265
    %vm1270 = vcmask 1042434
    %v1271 = vsel %vm1270, %v1266, %v1267
    %vm1272 = vcmask 1041408
    %v1273 = vsel %vm1272, %v1269, %v1271
    %vm1275 = vcmp.lt.s32.totalorder %v48, 512
    %vm1276 = vmand %vm49, %vm1275
    %1277 = vst.msk [vmem:[#allocation8] ss:$2 sm:$0xf] %vm1276, %v1273
    %1279 = vset.pattern.permute.xlu0 3
    %1280 = vperm.xlu0 %1279, %v1164
    %v1281 = vpop.permute.xlu0 %1280
    %v1284 = vsel %vm1048, %v1103, 0
    %v1287 = vsel %vm932, %v854, 0
    %v1290 = vsel %vm932, %v874, 0
    %v1293 = vsel %vm932, %v894, 0
    %v1296 = vsel %vm932, %v914, 0
    %1298 = vmatpush.msra.mxu0 0.0
    %1299 = vmatpush.msra.mxu0 0.0
    %1300 = vmatpush.msra.mxu0 0.0
    %1301 = vmatpush.msra.mxu0 0.0
    %1302 = vmatpush.msra.mxu0 0.0
    %1303 = vmatpush.msra.mxu0 0.0
    %1304 = vmatpush.msra.mxu0 0.0
    %1305 = vmatpush.msra.mxu0 0.0
    %1306 = vmatpush.msra.mxu0 0.0
    %1307 = vmatpush.msra.mxu0 0.0
    %1308 = vmatpush.msra.mxu0 0.0
    %1309 = vmatpush.msra.mxu0 0.0
    %1310 = vmatpush.msra.mxu0 0.0
    %1311 = vmatpush.msra.mxu0 0.0
    %1312 = vmatpush.msra.mxu0 0.0
    %1313 = vmatpush.msra.mxu0 %v1287
    %1314 = vmatmul.f32.gmra.mxu0 %v1284
    %v1315 = vpop.f32.mrf.mxu0
    %v1316 = vadd.f32 %v1281, %v1315
    %1317 = vdwg.mxu0
    %1318 = vmatpush.msra.mxu0 0.0
    %1319 = vmatpush.msra.mxu0 0.0
    %1320 = vmatpush.msra.mxu0 0.0
    %1321 = vmatpush.msra.mxu0 0.0
    %1322 = vmatpush.msra.mxu0 0.0
    %1323 = vmatpush.msra.mxu0 0.0
    %1324 = vmatpush.msra.mxu0 0.0
    %1325 = vmatpush.msra.mxu0 0.0
    %1326 = vmatpush.msra.mxu0 0.0
    %1327 = vmatpush.msra.mxu0 0.0
    %1328 = vmatpush.msra.mxu0 0.0
    %1329 = vmatpush.msra.mxu0 0.0
    %1330 = vmatpush.msra.mxu0 0.0
    %1331 = vmatpush.msra.mxu0 0.0
    %1332 = vmatpush.msra.mxu0 0.0
    %1333 = vmatpush.msra.mxu0 %v1290
    %1334 = vmatmul.f32.gmra.mxu0 %v1284
    %v1335 = vpop.f32.mrf.mxu0
    %v1336 = vadd.f32 %v1281, %v1335
    %1337 = vdwg.mxu0
    %1338 = vmatpush.msra.mxu0 0.0
    %1339 = vmatpush.msra.mxu0 0.0
    %1340 = vmatpush.msra.mxu0 0.0
    %1341 = vmatpush.msra.mxu0 0.0
    %1342 = vmatpush.msra.mxu0 0.0
    %1343 = vmatpush.msra.mxu0 0.0
    %1344 = vmatpush.msra.mxu0 0.0
    %1345 = vmatpush.msra.mxu0 0.0
    %1346 = vmatpush.msra.mxu0 0.0
    %1347 = vmatpush.msra.mxu0 0.0
    %1348 = vmatpush.msra.mxu0 0.0
    %1349 = vmatpush.msra.mxu0 0.0
    %1350 = vmatpush.msra.mxu0 0.0
    %1351 = vmatpush.msra.mxu0 0.0
    %1352 = vmatpush.msra.mxu0 0.0
    %1353 = vmatpush.msra.mxu0 %v1293
    %1354 = vmatmul.f32.gmra.mxu0 %v1284
    %v1355 = vpop.f32.mrf.mxu0
    %v1356 = vadd.f32 %v1281, %v1355
    %1357 = vdwg.mxu0
    %1358 = vmatpush.msra.mxu0 0.0
    %1359 = vmatpush.msra.mxu0 0.0
    %1360 = vmatpush.msra.mxu0 0.0
    %1361 = vmatpush.msra.mxu0 0.0
    %1362 = vmatpush.msra.mxu0 0.0
    %1363 = vmatpush.msra.mxu0 0.0
    %1364 = vmatpush.msra.mxu0 0.0
    %1365 = vmatpush.msra.mxu0 0.0
    %1366 = vmatpush.msra.mxu0 0.0
    %1367 = vmatpush.msra.mxu0 0.0
    %1368 = vmatpush.msra.mxu0 0.0
    %1369 = vmatpush.msra.mxu0 0.0
    %1370 = vmatpush.msra.mxu0 0.0
    %1371 = vmatpush.msra.mxu0 0.0
    %1372 = vmatpush.msra.mxu0 0.0
    %1373 = vmatpush.msra.mxu0 %v1296
    %1374 = vmatmul.f32.gmra.mxu0 %v1284
    %v1375 = vpop.f32.mrf.mxu0
    %v1376 = vadd.f32 %v1281, %v1375
    %1377 = vdwg.mxu0
    %v1382 = vrot.slane %v1336, 7
    %v1383 = vrot.slane %v1356, 6
    %v1384 = vrot.slane %v1376, 5
    %v1385 = vsel %vm1268, %v1316, %v1382
    %v1386 = vsel %vm1270, %v1383, %v1384
    %v1387 = vsel %vm1272, %v1385, %v1386
    %s1389 = scalar_lea.vmem [#allocation8], 1
    %1390 = vst.msk [vmem:[%s1389] ss:$2 sm:$0xf] %vm1276, %v1387
    // Predicated region
    $region18: #{tpu_custom_call.1} parent=1 // pred_check
      _
    $region19: #{tpu_custom_call.1} parent=1 // pred_check_branch
      %1392 = sbr.rel (0) target = $region21
    $region20: #{tpu_custom_call.1} parent=1 // pred_region
      %1394 = vsyncadd [#allocation5], 0
      %s1396 = sshll.u32 [#allocation8], 4
      %s1397 = int_to_ptr.vmem [resolvable:$true] %s1396
      %s1398 = sshll.u32 %s2, 4
      %s1399 = int_to_ptr.hbm [resolvable:$true] %s1398
      %1401 = dma.vmem_to_hbm [thread:$0]  %s1397, 128, %s1399, [#allocation5]
    $region21: #{tpu_custom_call.1} parent=1 // pred_fallthru
      _
    // Predicated region
    $region22: #{tpu_custom_call.1} parent=1 // pred_check
      _
    $region23: #{tpu_custom_call.1} parent=1 // pred_check_branch
      %1403 = sbr.rel (0) target = $region25
    $region24: #{tpu_custom_call.1} parent=1 // pred_region
      %1405 = dma.done [#allocation5], 128
    $region25: #{tpu_custom_call.1} parent=1 // pred_fallthru
      _
    %1406 = vsyncpa [#allocation4], 1
    %1407 = vsyncpa [#allocation7], 1
    %1408 = vsyncpa [#allocation5], 1

</llo_original>
